<compile_context>
chip_gen: v6e
topology: v6e:2x2x1
jax: 0.10.0
libtpu: 0.0.40
codegen_flags: <defaults>
</compile_context>

<pallas_src>
import functools

import jax
import jax.numpy as jnp
import numpy as np
from jax.experimental import pallas as pl
from jax.experimental.pallas import tpu as pltpu

LN_EPS = 1e-5
MASK_BIAS = -1e10
VMEM_LIMIT = 32 * 1024 * 1024


# ---------------------------------------------------------------------------
# In-kernel helpers (traced inline inside the Pallas kernels).
# ---------------------------------------------------------------------------
def _layer_norm(x, g, b):
    mu = jnp.mean(x, axis=-1, keepdims=True)
    var = jnp.mean((x - mu) ** 2, axis=-1, keepdims=True)
    return (x - mu) * jax.lax.rsqrt(var + LN_EPS) * g + b


def _mha(q, k, v, bias_qk, n_heads, head_dim):
    """Multi-head attention core.

    q: [Sq, H] f32 (scale already folded in), k/v: [Sk, H] f32,
    bias_qk: [Sq, Sk] additive mask (0 keep / -1e10 masked).
    Returns the [Sq, H] f32 context (pre output-projection).
    """
    head_outs = []
    for h in range(n_heads):                      # static loop over heads
        lo = h * head_dim
        qh = q[:, lo:lo + head_dim].astype(jnp.bfloat16)
        kh = k[:, lo:lo + head_dim].astype(jnp.bfloat16)
        vh = v[:, lo:lo + head_dim].astype(jnp.bfloat16)
        # q @ k^T on the MXU (bf16 operands, f32 accumulate).
        energy = jax.lax.dot_general(
            qh, kh, (((1,), (1,)), ((), ())),
            preferred_element_type=jnp.float32)            # [Sq, Sk]
        energy = energy + bias_qk
        m = jnp.max(energy, axis=-1, keepdims=True)
        e = jnp.exp(energy - m)
        attn = e * pl.reciprocal(jnp.sum(e, axis=-1, keepdims=True), approx=True)
        head_outs.append(jnp.dot(attn.astype(jnp.bfloat16), vh,
                                 preferred_element_type=jnp.float32))  # [Sq, hd]
    return jnp.concatenate(head_outs, axis=-1)             # [Sq, H]


# ---------------------------------------------------------------------------
# Encoder stack kernel: one (batch, layer) step per grid point; the activation
# lives in the output VMEM block across the whole layer sweep.
# ---------------------------------------------------------------------------
def _encoder_stack_kernel(emb_ref, bias_ref,
                          wqkv_ref, bqkv_ref, wo_ref, bo_ref,
                          ln1g_ref, ln1b_ref,
                          w1_ref, b1_ref, w2_ref, b2_ref,
                          ln2g_ref, ln2b_ref,
                          out_ref, *, n_heads, head_dim, inv_scale):
    l = pl.program_id(1)

    @pl.when(l == 0)
    def _():                                    # activation becomes VMEM-resident
        out_ref[...] = emb_ref[...]

    x = out_ref[...]                            # [S, H] f32
    S = x.shape[0]
    H = n_heads * head_dim
    bias = jnp.broadcast_to(bias_ref[...], (S, S))   # hoisted once per layer

    # --- fused QKV projection (one [H, 3H] matmul) ---------------------------
    qkv = jnp.dot(x.astype(jnp.bfloat16), wqkv_ref[...],
                  preferred_element_type=jnp.float32) + bqkv_ref[...]
    q = qkv[:, :H] * inv_scale                  # fold 1/sqrt(head_dim) into q
    ctx = _mha(q, qkv[:, H:2 * H], qkv[:, 2 * H:], bias, n_heads, head_dim)
    attn_out = jnp.dot(ctx.astype(jnp.bfloat16), wo_ref[...],
                       preferred_element_type=jnp.float32) + bo_ref[...]
    y = _layer_norm(x + attn_out, ln1g_ref[...], ln1b_ref[...])

    # --- positionwise FFN: fc_2(relu(fc_1(y))) -------------------------------
    h1 = jnp.maximum(
        jnp.dot(y.astype(jnp.bfloat16), w1_ref[...],
                preferred_element_type=jnp.float32) + b1_ref[...], 0.0)
    ff = jnp.dot(h1.astype(jnp.bfloat16), w2_ref[...],
                 preferred_element_type=jnp.float32) + b2_ref[...]
    out_ref[...] = _layer_norm(y + ff, ln2g_ref[...], ln2b_ref[...])


# ---------------------------------------------------------------------------
# Decoder stack kernel: masked self-attention + cross-attention + FFN, with
# the activation resident in VMEM scratch and the final vocab projection fused
# into the last layer (only logits are written back to HBM).
# ---------------------------------------------------------------------------
def _decoder_stack_kernel(emb_ref, enc_ref, tbias_ref, ebias_ref,
                          s_wqkv_ref, s_bqkv_ref, s_wo_ref, s_bo_ref,
                          ln1g_ref, ln1b_ref,
                          c_wq_ref, c_bq_ref, c_wkv_ref, c_bkv_ref,
                          c_wo_ref, c_bo_ref, ln2g_ref, ln2b_ref,
                          w1_ref, b1_ref, w2_ref, b2_ref, ln3g_ref, ln3b_ref,
                          fc_w_ref, fc_b_ref,
                          logits_ref, x_scratch,
                          *, n_heads, head_dim, inv_scale):
    l = pl.program_id(1)

    @pl.when(l == 0)
    def _():
        x_scratch[...] = emb_ref[...]

    x = x_scratch[...]                          # [T, H] f32
    enc = enc_ref[...]                          # [Senc, H] f32
    T = x.shape[0]
    Senc = enc.shape[0]
    H = n_heads * head_dim

    # --- masked self-attention ----------------------------------------------
    qkv = jnp.dot(x.astype(jnp.bfloat16), s_wqkv_ref[...],
                  preferred_element_type=jnp.float32) + s_bqkv_ref[...]
    q = qkv[:, :H] * inv_scale
    ctx = _mha(q, qkv[:, H:2 * H], qkv[:, 2 * H:], tbias_ref[...],
               n_heads, head_dim)
    sa = jnp.dot(ctx.astype(jnp.bfloat16), s_wo_ref[...],
                 preferred_element_type=jnp.float32) + s_bo_ref[...]
    y = _layer_norm(x + sa, ln1g_ref[...], ln1b_ref[...])

    # --- cross-attention over the encoder memory (fused KV projection) -------
    qc = (jnp.dot(y.astype(jnp.bfloat16), c_wq_ref[...],
                  preferred_element_type=jnp.float32) + c_bq_ref[...]) * inv_scale
    kvc = jnp.dot(enc.astype(jnp.bfloat16), c_wkv_ref[...],
                  preferred_element_type=jnp.float32) + c_bkv_ref[...]
    ebias = jnp.broadcast_to(ebias_ref[...], (T, Senc))
    ctx_c = _mha(qc, kvc[:, :H], kvc[:, H:], ebias, n_heads, head_dim)
    ca = jnp.dot(ctx_c.astype(jnp.bfloat16), c_wo_ref[...],
                 preferred_element_type=jnp.float32) + c_bo_ref[...]
    z = _layer_norm(y + ca, ln2g_ref[...], ln2b_ref[...])

    # --- positionwise FFN -----------------------------------------------------
    h1 = jnp.maximum(
        jnp.dot(z.astype(jnp.bfloat16), w1_ref[...],
                preferred_element_type=jnp.float32) + b1_ref[...], 0.0)
    ff = jnp.dot(h1.astype(jnp.bfloat16), w2_ref[...],
                 preferred_element_type=jnp.float32) + b2_ref[...]
    h_final = _layer_norm(z + ff, ln3g_ref[...], ln3b_ref[...])
    x_scratch[...] = h_final

    # --- fused vocab projection on the last layer ----------------------------
    @pl.when(l == pl.num_programs(1) - 1)
    def _():
        logits_ref[...] = (jnp.dot(h_final.astype(jnp.bfloat16), fc_w_ref[...],
                                   preferred_element_type=jnp.float32)
                           + fc_b_ref[...])


# ---------------------------------------------------------------------------
# SelectAttention: per-key importance weights (energy + masked softmax + sum
# over queries) in Pallas; top-k / gather stay in plain JAX.
# ---------------------------------------------------------------------------
def _select_weights_kernel(g1_ref, g2_ref, bias_ref, w_ref):
    g1 = g1_ref[...].astype(jnp.bfloat16)       # [S1, H]
    g2 = g2_ref[...].astype(jnp.bfloat16)       # [S2, H]
    energy = jax.lax.dot_general(g1, g2, (((1,), (1,)), ((), ())),
                                 preferred_element_type=jnp.float32)  # [S1, S2]
    energy = energy + bias_ref[...]             # [1, S2] broadcasts over queries
    m = jnp.max(energy, axis=-1, keepdims=True)
    e = jnp.exp(energy - m)
    attn = e * pl.reciprocal(jnp.sum(e, axis=-1, keepdims=True), approx=True)
    w_ref[...] = jnp.sum(attn, axis=0, keepdims=True)     # [1, S2]


# ---------------------------------------------------------------------------
# Wrappers.
# ---------------------------------------------------------------------------
ENC_WEIGHTS = ("wqkv", "bqkv", "wo", "bo", "ln1_g", "ln1_b",
               "w1", "b1", "w2", "b2", "ln2_g", "ln2_b")
DEC_WEIGHTS = ("s_wqkv", "s_bqkv", "s_wo", "s_bo", "ln1_g", "ln1_b",
               "c_wq", "c_bq", "c_wkv", "c_bkv", "c_wo", "c_bo",
               "ln2_g", "ln2_b",
               "w1", "b1", "w2", "b2", "ln3_g", "ln3_b")


def _stack_specs(weights):
    # Per-layer weights are stacked on a leading L axis; each grid step streams
    # one layer's slab (double-buffered by the Pallas pipeline).
    return [pl.BlockSpec((None,) + w.shape[1:], lambda b, l: (l, 0, 0))
            for w in weights]


def _weight_bytes(weights):
    return sum(int(np.prod(w.shape)) * w.dtype.itemsize for w in weights)


def encoder_stack(emb, mask_bool, params, n_heads):
    B, S, H = emb.shape
    assert H % n_heads == 0, "hidden_dim must be divisible by n_heads"
    head_dim = H // n_heads
    L = params["wqkv"].shape[0]
    P = params["w1"].shape[-1]
    weights = [params[n] for n in ENC_WEIGHTS]

    bias = jnp.where(mask_bool[:, None, :], 0.0, MASK_BIAS).astype(jnp.float32)

    kernel = functools.partial(_encoder_stack_kernel, n_heads=n_heads,
                               head_dim=head_dim,
                               inv_scale=float(1.0 / np.sqrt(head_dim)))

    flops = 2 * B * L * S * (3 * H * H + 2 * n_heads * S * head_dim
                             + H * H + 2 * H * P)
    cost = pl.CostEstimate(
        flops=int(flops),
        transcendentals=int(B * L * n_heads * S * S),
        bytes_accessed=int(2 * emb.size * 4 + bias.size * 4
                           + B * _weight_bytes(weights)))

    return pl.pallas_call(
        kernel,
        out_shape=jax.ShapeDtypeStruct((B, S, H), jnp.float32),
        grid_spec=pltpu.PrefetchScalarGridSpec(
            num_scalar_prefetch=0,
            grid=(B, L),
            in_specs=[pl.BlockSpec((None, S, H), lambda b, l: (b, 0, 0)),
                      pl.BlockSpec((None, 1, S), lambda b, l: (b, 0, 0)),
                      *_stack_specs(weights)],
            out_specs=pl.BlockSpec((None, S, H), lambda b, l: (b, 0, 0)),
        ),
        compiler_params=pltpu.CompilerParams(
            dimension_semantics=("parallel", "arbitrary"),
            vmem_limit_bytes=VMEM_LIMIT),
        cost_estimate=cost,
    )(emb, bias, *weights)


def decoder_stack(emb, enc_emb, trg_mask_bool, enc_mask_bool, params, n_heads):
    """Runs the decoder layer stack and the fused fc_out; returns logits."""
    B, T, H = emb.shape
    assert H % n_heads == 0, "hidden_dim must be divisible by n_heads"
    Senc = enc_emb.shape[1]
    head_dim = H // n_heads
    L = params["s_wqkv"].shape[0]
    P = params["w1"].shape[-1]
    V = params["fc_out_w"].shape[-1]
    weights = [params[n] for n in DEC_WEIGHTS]

    tbias = jnp.where(trg_mask_bool, 0.0, MASK_BIAS).astype(jnp.float32)      # [B,T,T]
    ebias = jnp.where(enc_mask_bool[:, None, :], 0.0,
                      MASK_BIAS).astype(jnp.float32)                           # [B,1,Senc]

    kernel = functools.partial(_decoder_stack_kernel, n_heads=n_heads,
                               head_dim=head_dim,
                               inv_scale=float(1.0 / np.sqrt(head_dim)))

    flops = 2 * B * L * (3 * T * H * H + 2 * n_heads * T * T * head_dim
                         + T * H * H
                         + T * H * H + 2 * Senc * H * H
                         + 2 * n_heads * T * Senc * head_dim + T * H * H
                         + 2 * T * H * P) + 2 * B * T * H * V
    cost = pl.CostEstimate(
        flops=int(flops),
        transcendentals=int(B * L * n_heads * (T * T + T * Senc)),
        bytes_accessed=int(emb.size * 4 + enc_emb.size * 4
                           + tbias.size * 4 + ebias.size * 4
                           + B * T * V * 4 + B * _weight_bytes(weights)))

    return pl.pallas_call(
        kernel,
        out_shape=jax.ShapeDtypeStruct((B, T, V), jnp.float32),
        grid_spec=pltpu.PrefetchScalarGridSpec(
            num_scalar_prefetch=0,
            grid=(B, L),
            in_specs=[pl.BlockSpec((None, T, H), lambda b, l: (b, 0, 0)),
                      pl.BlockSpec((None, Senc, H), lambda b, l: (b, 0, 0)),
                      pl.BlockSpec((None, T, T), lambda b, l: (b, 0, 0)),
                      pl.BlockSpec((None, 1, Senc), lambda b, l: (b, 0, 0)),
                      *_stack_specs(weights),
                      pl.BlockSpec((H, V), lambda b, l: (0, 0)),
                      pl.BlockSpec((1, V), lambda b, l: (0, 0))],
            out_specs=pl.BlockSpec((None, T, V), lambda b, l: (b, 0, 0)),
            scratch_shapes=[pltpu.VMEM((T, H), jnp.float32)],
        ),
        compiler_params=pltpu.CompilerParams(
            dimension_semantics=("parallel", "arbitrary"),
            vmem_limit_bytes=VMEM_LIMIT),
        cost_estimate=cost,
    )(emb, enc_emb, tbias, ebias, *weights,
      params["fc_out_w"], params["fc_out_b"])


def select_attention(g1_emb, g2_emb, g2_mask_bool, select_len):
    """SelectAttention.align: importance weights in Pallas, top-k + gather in JAX."""
    B, S1, H = g1_emb.shape
    S2 = g2_emb.shape[1]
    bias2 = jnp.where(g2_mask_bool[:, None, :], 0.0, MASK_BIAS).astype(jnp.float32)

    weights = pl.pallas_call(
        _select_weights_kernel,
        out_shape=jax.ShapeDtypeStruct((B, 1, S2), jnp.float32),
        grid_spec=pltpu.PrefetchScalarGridSpec(
            num_scalar_prefetch=0,
            grid=(B,),
            in_specs=[pl.BlockSpec((None, S1, H), lambda b: (b, 0, 0)),
                      pl.BlockSpec((None, S2, H), lambda b: (b, 0, 0)),
                      pl.BlockSpec((None, 1, S2), lambda b: (b, 0, 0))],
            out_specs=pl.BlockSpec((None, 1, S2), lambda b: (b, 0, 0)),
        ),
        compiler_params=pltpu.CompilerParams(
            dimension_semantics=("parallel",),
            vmem_limit_bytes=VMEM_LIMIT),
    )(g1_emb, g2_emb, bias2)[:, 0, :]                        # [B, S2]

    # TODO(synk): descending sort / top-k selection and the index gathers have
    # no clean Pallas equivalent; done with lax.top_k / take_along_axis in JAX.
    _, sort_idx = jax.lax.top_k(weights, select_len)         # [B, select_len]
    x_mask = jnp.take_along_axis(g2_mask_bool, sort_idx, axis=1)
    x = jnp.take_along_axis(g2_emb, sort_idx[:, :, None], axis=1)
    return x, x_mask


def _embed(tokens, tok_emb, pos_emb):
    B, S = tokens.shape
    H = tok_emb.shape[1]
    scale = jnp.sqrt(jnp.float32(H))
    x = tok_emb[tokens] * scale + pos_emb[:S][None, :, :]
    # TODO(synk): dropout layers are identity (inference / eval mode).
    return x.astype(jnp.float32)


def encode(tokens, mask_bool, enc_params, n_heads):
    x = _embed(tokens, enc_params["tok_emb"], enc_params["pos_emb"])
    return encoder_stack(x, mask_bool, enc_params, n_heads)


def transformer_forward(keys, guide1, guide2, tgt, params):
    n_heads = params["n_heads"]
    src_pad = params["src_pad_idx"]
    trg_pad = params["trg_pad_idx"]

    keys_mask = keys != src_pad                 # [B, Sk] bool, True = keep
    g1_mask = guide1 != src_pad
    g2_mask = guide2 != src_pad

    keys_emb = encode(keys, keys_mask, params["src_encoder"], n_heads)
    g1_emb = encode(guide1, g1_mask, params["tgt_encoder"], n_heads)
    g2_emb = encode(guide2, g2_mask, params["tgt_encoder"], n_heads)

    add_emb, add_mask = select_attention(g1_emb, g2_emb, g2_mask,
                                         params["select_len"])

    tgt_in = tgt[:, :-1]
    T = tgt_in.shape[1]
    trg_pad_mask = (tgt_in != trg_pad)[:, None, :]           # [B, 1, T]
    causal = jnp.tril(jnp.ones((T, T), jnp.bool_))[None]     # [1, T, T]
    trg_mask = jnp.logical_and(trg_pad_mask, causal)         # [B, T, T]

    enc_emb = jnp.concatenate([keys_emb, add_emb], axis=1)   # [B, Sk+len, H]
    enc_mask = jnp.concatenate([keys_mask, add_mask], axis=-1)

    dec = params["decoder"]
    tgt_emb = _embed(tgt_in, dec["tok_emb"], dec["pos_emb"])
    logits = decoder_stack(tgt_emb, enc_emb, trg_mask, enc_mask, dec, n_heads)
    return logits


# ---------------------------------------------------------------------------
# Deterministic parameter construction (matmul weights in bf16, norms/bias f32).
# ---------------------------------------------------------------------------
def _param_factory(key):
    state = {"key": key}

    def dense(shape, scale=0.05, dtype=jnp.float32):
        state["key"], sub = jax.random.split(state["key"])
        return (jax.random.normal(sub, shape, dtype=jnp.float32) * scale).astype(dtype)

    return dense


def make_encoder_params(key, vocab, max_len, H, P, L):
    dense = _param_factory(key)
    bf = jnp.bfloat16
    return {
        "tok_emb": dense((vocab, H), 0.1),
        "pos_emb": dense((max_len, H), 0.1),
        "wqkv": dense((L, H, 3 * H), dtype=bf), "bqkv": dense((L, 1, 3 * H)),
        "wo": dense((L, H, H), dtype=bf), "bo": dense((L, 1, H)),
        "ln1_g": jnp.ones((L, 1, H), jnp.float32),
        "ln1_b": jnp.zeros((L, 1, H), jnp.float32),
        "w1": dense((L, H, P), dtype=bf), "b1": dense((L, 1, P)),
        "w2": dense((L, P, H), dtype=bf), "b2": dense((L, 1, H)),
        "ln2_g": jnp.ones((L, 1, H), jnp.float32),
        "ln2_b": jnp.zeros((L, 1, H), jnp.float32),
    }


def make_decoder_params(key, vocab, max_len, H, P, L):
    dense = _param_factory(key)
    bf = jnp.bfloat16
    return {
        "tok_emb": dense((vocab, H), 0.1),
        "pos_emb": dense((max_len, H), 0.1),
        "s_wqkv": dense((L, H, 3 * H), dtype=bf), "s_bqkv": dense((L, 1, 3 * H)),
        "s_wo": dense((L, H, H), dtype=bf), "s_bo": dense((L, 1, H)),
        "ln1_g": jnp.ones((L, 1, H), jnp.float32),
        "ln1_b": jnp.zeros((L, 1, H), jnp.float32),
        "c_wq": dense((L, H, H), dtype=bf), "c_bq": dense((L, 1, H)),
        "c_wkv": dense((L, H, 2 * H), dtype=bf), "c_bkv": dense((L, 1, 2 * H)),
        "c_wo": dense((L, H, H), dtype=bf), "c_bo": dense((L, 1, H)),
        "ln2_g": jnp.ones((L, 1, H), jnp.float32),
        "ln2_b": jnp.zeros((L, 1, H), jnp.float32),
        "w1": dense((L, H, P), dtype=bf), "b1": dense((L, 1, P)),
        "w2": dense((L, P, H), dtype=bf), "b2": dense((L, 1, H)),
        "ln3_g": jnp.ones((L, 1, H), jnp.float32),
        "ln3_b": jnp.zeros((L, 1, H), jnp.float32),
        "fc_out_w": dense((H, vocab), dtype=bf),
        "fc_out_b": jnp.zeros((1, vocab), jnp.float32),
    }


if __name__ == "__main__":
    B = 2
    S_keys, S_guide, S_tgt = 8, 12, 9           # decoder consumes tgt[:, :-1] -> 8
    vocab, max_len = 50, 100
    hidden_dim, pf_dim = 32, 64
    n_enc_layers, n_dec_layers, n_heads = 2, 2, 4
    select_len = 10                              # SelectAttention(emb_dim, 10, opt)
    pad_idx = 0

    root = jax.random.PRNGKey(0)
    k_tok, k_src, k_tgt_enc, k_dec = jax.random.split(root, 4)
    kk = jax.random.split(k_tok, 4)

    def tokens(k, shape):
        return jax.random.randint(k, shape, 1, vocab, dtype=jnp.int32)

    keys = tokens(kk[0], (B, S_keys)).at[1, S_keys - 2:].set(pad_idx)
    guide1 = tokens(kk[1], (B, S_guide)).at[0, S_guide - 1:].set(pad_idx)
    guide2 = tokens(kk[2], (B, S_guide)).at[1, S_guide - 3:].set(pad_idx)
    tgt = tokens(kk[3], (B, S_tgt))

    params = {
        "n_heads": n_heads,
        "src_pad_idx": pad_idx,
        "trg_pad_idx": pad_idx,
        "select_len": select_len,
        "src_encoder": make_encoder_params(k_src, vocab, max_len,
                                           hidden_dim, pf_dim, n_enc_layers),
        "tgt_encoder": make_encoder_params(k_tgt_enc, vocab, max_len,
                                           hidden_dim, pf_dim, n_enc_layers),
        "decoder": make_decoder_params(k_dec, vocab, max_len,
                                       hidden_dim, pf_dim, n_dec_layers),
    }

    out = transformer_forward(keys, guide1, guide2, tgt, params)
    out = jax.block_until_ready(out)
    assert out.shape == (B, S_tgt - 1, vocab)
    assert bool(jnp.all(jnp.isfinite(out)))
    print("KERNEL_OK")
</pallas_src>

<mosaic_0001>
module attributes {stable_mosaic.version = 11 : i64} {
  func.func @_encoder_stack_kernel(%arg0: i32, %arg1: i32, %arg2: memref<1x8x32xf32, #tpu.memory_space<vmem>>, %arg3: memref<1x1x8xf32, #tpu.memory_space<vmem>>, %arg4: memref<1x32x96xbf16, #tpu.memory_space<vmem>>, %arg5: memref<1x1x96xf32, #tpu.memory_space<vmem>>, %arg6: memref<1x32x32xbf16, #tpu.memory_space<vmem>>, %arg7: memref<1x1x32xf32, #tpu.memory_space<vmem>>, %arg8: memref<1x1x32xf32, #tpu.memory_space<vmem>>, %arg9: memref<1x1x32xf32, #tpu.memory_space<vmem>>, %arg10: memref<1x32x64xbf16, #tpu.memory_space<vmem>>, %arg11: memref<1x1x64xf32, #tpu.memory_space<vmem>>, %arg12: memref<1x64x32xbf16, #tpu.memory_space<vmem>>, %arg13: memref<1x1x32xf32, #tpu.memory_space<vmem>>, %arg14: memref<1x1x32xf32, #tpu.memory_space<vmem>>, %arg15: memref<1x1x32xf32, #tpu.memory_space<vmem>>, %arg16: memref<1x8x32xf32, #tpu.memory_space<vmem>>) attributes {dimension_semantics = [#tpu.dimension_semantics<parallel>, #tpu.dimension_semantics<arbitrary>], iteration_bounds = array<i64: 2, 2>, scalar_prefetch = 0 : i64, scratch_operands = 0 : i64, tpu.core_type = #tpu.core_type<tc>, window_params = [{transform_indices = @transform_0, window_bounds = array<i64: 1, 8, 32>}, {transform_indices = @transform_1, window_bounds = array<i64: 1, 1, 8>}, {transform_indices = @transform_2, window_bounds = array<i64: 1, 32, 96>}, {transform_indices = @transform_3, window_bounds = array<i64: 1, 1, 96>}, {transform_indices = @transform_4, window_bounds = array<i64: 1, 32, 32>}, {transform_indices = @transform_5, window_bounds = array<i64: 1, 1, 32>}, {transform_indices = @transform_6, window_bounds = array<i64: 1, 1, 32>}, {transform_indices = @transform_7, window_bounds = array<i64: 1, 1, 32>}, {transform_indices = @transform_8, window_bounds = array<i64: 1, 32, 64>}, {transform_indices = @transform_9, window_bounds = array<i64: 1, 1, 64>}, {transform_indices = @transform_10, window_bounds = array<i64: 1, 64, 32>}, {transform_indices = @transform_11, window_bounds = array<i64: 1, 1, 32>}, {transform_indices = @transform_12, window_bounds = array<i64: 1, 1, 32>}, {transform_indices = @transform_13, window_bounds = array<i64: 1, 1, 32>}, {transform_indices = @transform_14, window_bounds = array<i64: 1, 8, 32>}]} {
    %c0_i32 = arith.constant 0 : i32
    %0 = arith.cmpi eq, %arg1, %c0_i32 : i32
    %1 = arith.extui %0 : i1 to i32
    %c0_i32_0 = arith.constant 0 : i32
    %2 = arith.cmpi ne, %1, %c0_i32_0 : i32
    scf.if %2 {
      %c0_76 = arith.constant 0 : index
      %c0_77 = arith.constant 0 : index
      %c0_78 = arith.constant 0 : index
      %186 = vector.load %arg2[%c0_76, %c0_77, %c0_78] : memref<1x8x32xf32, #tpu.memory_space<vmem>>, vector<1x8x32xf32>
      %187 = vector.shape_cast %186 : vector<1x8x32xf32> to vector<8x32xf32>
      %c0_79 = arith.constant 0 : index
      %c0_80 = arith.constant 0 : index
      %c0_81 = arith.constant 0 : index
      %188 = vector.load %arg16[%c0_79, %c0_80, %c0_81] : memref<1x8x32xf32, #tpu.memory_space<vmem>>, vector<1x8x32xf32>
      %189 = vector.shape_cast %188 : vector<1x8x32xf32> to vector<8x32xf32>
      %190 = vector.shape_cast %187 : vector<8x32xf32> to vector<1x8x32xf32>
      tpu.vector_store %arg16[%c0_79, %c0_80, %c0_81], %190 {strides = array<i32>} : memref<1x8x32xf32, #tpu.memory_space<vmem>>, vector<1x8x32xf32>,
    } else {
    }
    %c0 = arith.constant 0 : index
    %c0_1 = arith.constant 0 : index
    %c0_2 = arith.constant 0 : index
    %3 = vector.load %arg16[%c0, %c0_1, %c0_2] : memref<1x8x32xf32, #tpu.memory_space<vmem>>, vector<1x8x32xf32>
    %4 = vector.shape_cast %3 : vector<1x8x32xf32> to vector<8x32xf32>
    %c0_3 = arith.constant 0 : index
    %c0_4 = arith.constant 0 : index
    %c0_5 = arith.constant 0 : index
    %5 = vector.load %arg3[%c0_3, %c0_4, %c0_5] : memref<1x1x8xf32, #tpu.memory_space<vmem>>, vector<1x1x8xf32>
    %6 = vector.shape_cast %5 : vector<1x1x8xf32> to vector<1x8xf32>
    %7 = vector.shape_cast %6 : vector<1x8xf32> to vector<1x8xf32>
    %8 = vector.broadcast %7 : vector<1x8xf32> to vector<8x8xf32>
    %9 = arith.truncf %4 : vector<8x32xf32> to vector<8x32xbf16>
    %c0_6 = arith.constant 0 : index
    %c0_7 = arith.constant 0 : index
    %c0_8 = arith.constant 0 : index
    %10 = vector.load %arg4[%c0_6, %c0_7, %c0_8] : memref<1x32x96xbf16, #tpu.memory_space<vmem>>, vector<1x32x96xbf16>
    %11 = vector.shape_cast %10 : vector<1x32x96xbf16> to vector<32x96xbf16>
    %cst = arith.constant dense<0.000000e+00> : vector<8x96xf32>
    %12 = tpu.matmul %9, %11, %cst {dimension_numbers = #tpu.dot_dimension_numbers<[1], [0], [0], [1], [0, 0, 1, 1], [], []>} : vector<8x32xbf16>, vector<32x96xbf16>, vector<8x96xf32> -> vector<8x96xf32>
    %c0_9 = arith.constant 0 : index
    %c0_10 = arith.constant 0 : index
    %c0_11 = arith.constant 0 : index
    %13 = vector.load %arg5[%c0_9, %c0_10, %c0_11] : memref<1x1x96xf32, #tpu.memory_space<vmem>>, vector<1x1x96xf32>
    %14 = vector.shape_cast %13 : vector<1x1x96xf32> to vector<1x96xf32>
    %15 = vector.broadcast %14 : vector<1x96xf32> to vector<8x96xf32>
    %16 = arith.addf %12, %15 : vector<8x96xf32>
    %17 = vector.extract_strided_slice %16 {offsets = [0, 0], sizes = [8, 32], strides = [1, 1]} : vector<8x96xf32> to vector<8x32xf32>
    %cst_12 = arith.constant 0.353553385 : f32
    %18 = vector.broadcast %cst_12 : f32 to vector<8x32xf32>
    %19 = arith.mulf %17, %18 : vector<8x32xf32>
    %20 = vector.extract_strided_slice %16 {offsets = [0, 32], sizes = [8, 32], strides = [1, 1]} : vector<8x96xf32> to vector<8x32xf32>
    %21 = vector.extract_strided_slice %16 {offsets = [0, 64], sizes = [8, 32], strides = [1, 1]} : vector<8x96xf32> to vector<8x32xf32>
    %22 = vector.extract_strided_slice %19 {offsets = [0, 0], sizes = [8, 8], strides = [1, 1]} : vector<8x32xf32> to vector<8x8xf32>
    %23 = arith.truncf %22 : vector<8x8xf32> to vector<8x8xbf16>
    %24 = vector.extract_strided_slice %20 {offsets = [0, 0], sizes = [8, 8], strides = [1, 1]} : vector<8x32xf32> to vector<8x8xf32>
    %25 = arith.truncf %24 : vector<8x8xf32> to vector<8x8xbf16>
    %26 = vector.extract_strided_slice %21 {offsets = [0, 0], sizes = [8, 8], strides = [1, 1]} : vector<8x32xf32> to vector<8x8xf32>
    %27 = arith.truncf %26 : vector<8x8xf32> to vector<8x8xbf16>
    %cst_13 = arith.constant dense<0.000000e+00> : vector<8x8xf32>
    %28 = tpu.matmul %23, %25, %cst_13 {dimension_numbers = #tpu.dot_dimension_numbers<[1], [1], [0], [0], [0, 0, 1, 0], [], []>} : vector<8x8xbf16>, vector<8x8xbf16>, vector<8x8xf32> -> vector<8x8xf32>
    %29 = arith.addf %28, %8 : vector<8x8xf32>
    %cst_14 = arith.constant dense<0xFF800000> : vector<8xf32>
    %30 = vector.multi_reduction <maximumf>, %29, %cst_14 [1] : vector<8x8xf32> to vector<8xf32>
    %31 = vector.shape_cast %30 : vector<8xf32> to vector<8x1xf32>
    %32 = vector.broadcast %31 : vector<8x1xf32> to vector<8x8xf32>
    %33 = arith.subf %29, %32 : vector<8x8xf32>
    %34 = math.exp %33 : vector<8x8xf32>
    %cst_15 = arith.constant dense<0.000000e+00> : vector<8xf32>
    %35 = vector.multi_reduction <add>, %34, %cst_15 [1] : vector<8x8xf32> to vector<8xf32>
    %36 = vector.shape_cast %35 : vector<8xf32> to vector<8x1xf32>
    %37 = tpu.reciprocal %36 {approx = true} : vector<8x1xf32> -> vector<8x1xf32>
    %38 = vector.broadcast %37 : vector<8x1xf32> to vector<8x8xf32>
    %39 = arith.mulf %34, %38 : vector<8x8xf32>
    %40 = arith.truncf %39 : vector<8x8xf32> to vector<8x8xbf16>
    %cst_16 = arith.constant dense<0.000000e+00> : vector<8x8xf32>
    %41 = tpu.matmul %40, %27, %cst_16 {dimension_numbers = #tpu.dot_dimension_numbers<[1], [0], [0], [1], [0, 0, 1, 1], [], []>} : vector<8x8xbf16>, vector<8x8xbf16>, vector<8x8xf32> -> vector<8x8xf32>
    %42 = vector.extract_strided_slice %19 {offsets = [0, 8], sizes = [8, 8], strides = [1, 1]} : vector<8x32xf32> to vector<8x8xf32>
    %43 = arith.truncf %42 : vector<8x8xf32> to vector<8x8xbf16>
    %44 = vector.extract_strided_slice %20 {offsets = [0, 8], sizes = [8, 8], strides = [1, 1]} : vector<8x32xf32> to vector<8x8xf32>
    %45 = arith.truncf %44 : vector<8x8xf32> to vector<8x8xbf16>
    %46 = vector.extract_strided_slice %21 {offsets = [0, 8], sizes = [8, 8], strides = [1, 1]} : vector<8x32xf32> to vector<8x8xf32>
    %47 = arith.truncf %46 : vector<8x8xf32> to vector<8x8xbf16>
    %cst_17 = arith.constant dense<0.000000e+00> : vector<8x8xf32>
    %48 = tpu.matmul %43, %45, %cst_17 {dimension_numbers = #tpu.dot_dimension_numbers<[1], [1], [0], [0], [0, 0, 1, 0], [], []>} : vector<8x8xbf16>, vector<8x8xbf16>, vector<8x8xf32> -> vector<8x8xf32>
    %49 = arith.addf %48, %8 : vector<8x8xf32>
    %cst_18 = arith.constant dense<0xFF800000> : vector<8xf32>
    %50 = vector.multi_reduction <maximumf>, %49, %cst_18 [1] : vector<8x8xf32> to vector<8xf32>
    %51 = vector.shape_cast %50 : vector<8xf32> to vector<8x1xf32>
    %52 = vector.broadcast %51 : vector<8x1xf32> to vector<8x8xf32>
    %53 = arith.subf %49, %52 : vector<8x8xf32>
    %54 = math.exp %53 : vector<8x8xf32>
    %cst_19 = arith.constant dense<0.000000e+00> : vector<8xf32>
    %55 = vector.multi_reduction <add>, %54, %cst_19 [1] : vector<8x8xf32> to vector<8xf32>
    %56 = vector.shape_cast %55 : vector<8xf32> to vector<8x1xf32>
    %57 = tpu.reciprocal %56 {approx = true} : vector<8x1xf32> -> vector<8x1xf32>
    %58 = vector.broadcast %57 : vector<8x1xf32> to vector<8x8xf32>
    %59 = arith.mulf %54, %58 : vector<8x8xf32>
    %60 = arith.truncf %59 : vector<8x8xf32> to vector<8x8xbf16>
    %cst_20 = arith.constant dense<0.000000e+00> : vector<8x8xf32>
    %61 = tpu.matmul %60, %47, %cst_20 {dimension_numbers = #tpu.dot_dimension_numbers<[1], [0], [0], [1], [0, 0, 1, 1], [], []>} : vector<8x8xbf16>, vector<8x8xbf16>, vector<8x8xf32> -> vector<8x8xf32>
    %62 = vector.extract_strided_slice %19 {offsets = [0, 16], sizes = [8, 8], strides = [1, 1]} : vector<8x32xf32> to vector<8x8xf32>
    %63 = arith.truncf %62 : vector<8x8xf32> to vector<8x8xbf16>
    %64 = vector.extract_strided_slice %20 {offsets = [0, 16], sizes = [8, 8], strides = [1, 1]} : vector<8x32xf32> to vector<8x8xf32>
    %65 = arith.truncf %64 : vector<8x8xf32> to vector<8x8xbf16>
    %66 = vector.extract_strided_slice %21 {offsets = [0, 16], sizes = [8, 8], strides = [1, 1]} : vector<8x32xf32> to vector<8x8xf32>
    %67 = arith.truncf %66 : vector<8x8xf32> to vector<8x8xbf16>
    %cst_21 = arith.constant dense<0.000000e+00> : vector<8x8xf32>
    %68 = tpu.matmul %63, %65, %cst_21 {dimension_numbers = #tpu.dot_dimension_numbers<[1], [1], [0], [0], [0, 0, 1, 0], [], []>} : vector<8x8xbf16>, vector<8x8xbf16>, vector<8x8xf32> -> vector<8x8xf32>
    %69 = arith.addf %68, %8 : vector<8x8xf32>
    %cst_22 = arith.constant dense<0xFF800000> : vector<8xf32>
    %70 = vector.multi_reduction <maximumf>, %69, %cst_22 [1] : vector<8x8xf32> to vector<8xf32>
    %71 = vector.shape_cast %70 : vector<8xf32> to vector<8x1xf32>
    %72 = vector.broadcast %71 : vector<8x1xf32> to vector<8x8xf32>
    %73 = arith.subf %69, %72 : vector<8x8xf32>
    %74 = math.exp %73 : vector<8x8xf32>
    %cst_23 = arith.constant dense<0.000000e+00> : vector<8xf32>
    %75 = vector.multi_reduction <add>, %74, %cst_23 [1] : vector<8x8xf32> to vector<8xf32>
    %76 = vector.shape_cast %75 : vector<8xf32> to vector<8x1xf32>
    %77 = tpu.reciprocal %76 {approx = true} : vector<8x1xf32> -> vector<8x1xf32>
    %78 = vector.broadcast %77 : vector<8x1xf32> to vector<8x8xf32>
    %79 = arith.mulf %74, %78 : vector<8x8xf32>
    %80 = arith.truncf %79 : vector<8x8xf32> to vector<8x8xbf16>
    %cst_24 = arith.constant dense<0.000000e+00> : vector<8x8xf32>
    %81 = tpu.matmul %80, %67, %cst_24 {dimension_numbers = #tpu.dot_dimension_numbers<[1], [0], [0], [1], [0, 0, 1, 1], [], []>} : vector<8x8xbf16>, vector<8x8xbf16>, vector<8x8xf32> -> vector<8x8xf32>
    %82 = vector.extract_strided_slice %19 {offsets = [0, 24], sizes = [8, 8], strides = [1, 1]} : vector<8x32xf32> to vector<8x8xf32>
    %83 = arith.truncf %82 : vector<8x8xf32> to vector<8x8xbf16>
    %84 = vector.extract_strided_slice %20 {offsets = [0, 24], sizes = [8, 8], strides = [1, 1]} : vector<8x32xf32> to vector<8x8xf32>
    %85 = arith.truncf %84 : vector<8x8xf32> to vector<8x8xbf16>
    %86 = vector.extract_strided_slice %21 {offsets = [0, 24], sizes = [8, 8], strides = [1, 1]} : vector<8x32xf32> to vector<8x8xf32>
    %87 = arith.truncf %86 : vector<8x8xf32> to vector<8x8xbf16>
    %cst_25 = arith.constant dense<0.000000e+00> : vector<8x8xf32>
    %88 = tpu.matmul %83, %85, %cst_25 {dimension_numbers = #tpu.dot_dimension_numbers<[1], [1], [0], [0], [0, 0, 1, 0], [], []>} : vector<8x8xbf16>, vector<8x8xbf16>, vector<8x8xf32> -> vector<8x8xf32>
    %89 = arith.addf %88, %8 : vector<8x8xf32>
    %cst_26 = arith.constant dense<0xFF800000> : vector<8xf32>
    %90 = vector.multi_reduction <maximumf>, %89, %cst_26 [1] : vector<8x8xf32> to vector<8xf32>
    %91 = vector.shape_cast %90 : vector<8xf32> to vector<8x1xf32>
    %92 = vector.broadcast %91 : vector<8x1xf32> to vector<8x8xf32>
    %93 = arith.subf %89, %92 : vector<8x8xf32>
    %94 = math.exp %93 : vector<8x8xf32>
    %cst_27 = arith.constant dense<0.000000e+00> : vector<8xf32>
    %95 = vector.multi_reduction <add>, %94, %cst_27 [1] : vector<8x8xf32> to vector<8xf32>
    %96 = vector.shape_cast %95 : vector<8xf32> to vector<8x1xf32>
    %97 = tpu.reciprocal %96 {approx = true} : vector<8x1xf32> -> vector<8x1xf32>
    %98 = vector.broadcast %97 : vector<8x1xf32> to vector<8x8xf32>
    %99 = arith.mulf %94, %98 : vector<8x8xf32>
    %100 = arith.truncf %99 : vector<8x8xf32> to vector<8x8xbf16>
    %cst_28 = arith.constant dense<0.000000e+00> : vector<8x8xf32>
    %101 = tpu.matmul %100, %87, %cst_28 {dimension_numbers = #tpu.dot_dimension_numbers<[1], [0], [0], [1], [0, 0, 1, 1], [], []>} : vector<8x8xbf16>, vector<8x8xbf16>, vector<8x8xf32> -> vector<8x8xf32>
    %102 = tpu.concatenate %41, %61, %81, %101 in 1 : vector<8x8xf32>, vector<8x8xf32>, vector<8x8xf32>, vector<8x8xf32> -> vector<8x32xf32>
    %103 = arith.truncf %102 : vector<8x32xf32> to vector<8x32xbf16>
    %c0_29 = arith.constant 0 : index
    %c0_30 = arith.constant 0 : index
    %c0_31 = arith.constant 0 : index
    %104 = vector.load %arg6[%c0_29, %c0_30, %c0_31] : memref<1x32x32xbf16, #tpu.memory_space<vmem>>, vector<1x32x32xbf16>
    %105 = vector.shape_cast %104 : vector<1x32x32xbf16> to vector<32x32xbf16>
    %cst_32 = arith.constant dense<0.000000e+00> : vector<8x32xf32>
    %106 = tpu.matmul %103, %105, %cst_32 {dimension_numbers = #tpu.dot_dimension_numbers<[1], [0], [0], [1], [0, 0, 1, 1], [], []>} : vector<8x32xbf16>, vector<32x32xbf16>, vector<8x32xf32> -> vector<8x32xf32>
    %c0_33 = arith.constant 0 : index
    %c0_34 = arith.constant 0 : index
    %c0_35 = arith.constant 0 : index
    %107 = vector.load %arg7[%c0_33, %c0_34, %c0_35] : memref<1x1x32xf32, #tpu.memory_space<vmem>>, vector<1x1x32xf32>
    %108 = vector.shape_cast %107 : vector<1x1x32xf32> to vector<1x32xf32>
    %109 = vector.broadcast %108 : vector<1x32xf32> to vector<8x32xf32>
    %110 = arith.addf %106, %109 : vector<8x32xf32>
    %111 = arith.addf %4, %110 : vector<8x32xf32>
    %c0_36 = arith.constant 0 : index
    %c0_37 = arith.constant 0 : index
    %c0_38 = arith.constant 0 : index
    %112 = vector.load %arg8[%c0_36, %c0_37, %c0_38] : memref<1x1x32xf32, #tpu.memory_space<vmem>>, vector<1x1x32xf32>
    %113 = vector.shape_cast %112 : vector<1x1x32xf32> to vector<1x32xf32>
    %c0_39 = arith.constant 0 : index
    %c0_40 = arith.constant 0 : index
    %c0_41 = arith.constant 0 : index
    %114 = vector.load %arg9[%c0_39, %c0_40, %c0_41] : memref<1x1x32xf32, #tpu.memory_space<vmem>>, vector<1x1x32xf32>
    %115 = vector.shape_cast %114 : vector<1x1x32xf32> to vector<1x32xf32>
    %cst_42 = arith.constant dense<0.000000e+00> : vector<8xf32>
    %116 = vector.multi_reduction <add>, %111, %cst_42 [1] : vector<8x32xf32> to vector<8xf32>
    %117 = vector.shape_cast %116 : vector<8xf32> to vector<8x1xf32>
    %cst_43 = arith.constant 3.200000e+01 : f32
    %118 = vector.broadcast %cst_43 : f32 to vector<8x1xf32>
    %119 = arith.divf %117, %118 : vector<8x1xf32>
    %120 = vector.broadcast %119 : vector<8x1xf32> to vector<8x32xf32>
    %121 = arith.subf %111, %120 : vector<8x32xf32>
    %122 = arith.mulf %121, %121 : vector<8x32xf32>
    %cst_44 = arith.constant dense<0.000000e+00> : vector<8xf32>
    %123 = vector.multi_reduction <add>, %122, %cst_44 [1] : vector<8x32xf32> to vector<8xf32>
    %124 = vector.shape_cast %123 : vector<8xf32> to vector<8x1xf32>
    %cst_45 = arith.constant 3.200000e+01 : f32
    %125 = vector.broadcast %cst_45 : f32 to vector<8x1xf32>
    %126 = arith.divf %124, %125 : vector<8x1xf32>
    %127 = vector.broadcast %119 : vector<8x1xf32> to vector<8x32xf32>
    %128 = arith.subf %111, %127 : vector<8x32xf32>
    %cst_46 = arith.constant 9.99999974E-6 : f32
    %129 = vector.broadcast %cst_46 : f32 to vector<8x1xf32>
    %130 = arith.addf %126, %129 : vector<8x1xf32>
    %131 = math.rsqrt %130 : vector<8x1xf32>
    %132 = vector.broadcast %131 : vector<8x1xf32> to vector<8x32xf32>
    %133 = arith.mulf %128, %132 : vector<8x32xf32>
    %134 = vector.broadcast %113 : vector<1x32xf32> to vector<8x32xf32>
    %135 = arith.mulf %133, %134 : vector<8x32xf32>
    %136 = vector.broadcast %115 : vector<1x32xf32> to vector<8x32xf32>
    %137 = arith.addf %135, %136 : vector<8x32xf32>
    %138 = arith.truncf %137 : vector<8x32xf32> to vector<8x32xbf16>
    %c0_47 = arith.constant 0 : index
    %c0_48 = arith.constant 0 : index
    %c0_49 = arith.constant 0 : index
    %139 = vector.load %arg10[%c0_47, %c0_48, %c0_49] : memref<1x32x64xbf16, #tpu.memory_space<vmem>>, vector<1x32x64xbf16>
    %140 = vector.shape_cast %139 : vector<1x32x64xbf16> to vector<32x64xbf16>
    %cst_50 = arith.constant dense<0.000000e+00> : vector<8x64xf32>
    %141 = tpu.matmul %138, %140, %cst_50 {dimension_numbers = #tpu.dot_dimension_numbers<[1], [0], [0], [1], [0, 0, 1, 1], [], []>} : vector<8x32xbf16>, vector<32x64xbf16>, vector<8x64xf32> -> vector<8x64xf32>
    %c0_51 = arith.constant 0 : index
    %c0_52 = arith.constant 0 : index
    %c0_53 = arith.constant 0 : index
    %142 = vector.load %arg11[%c0_51, %c0_52, %c0_53] : memref<1x1x64xf32, #tpu.memory_space<vmem>>, vector<1x1x64xf32>
    %143 = vector.shape_cast %142 : vector<1x1x64xf32> to vector<1x64xf32>
    %144 = vector.broadcast %143 : vector<1x64xf32> to vector<8x64xf32>
    %145 = arith.addf %141, %144 : vector<8x64xf32>
    %cst_54 = arith.constant 0.000000e+00 : f32
    %146 = vector.broadcast %cst_54 : f32 to vector<8x64xf32>
    %147 = arith.maximumf %145, %146 : vector<8x64xf32>
    %148 = arith.truncf %147 : vector<8x64xf32> to vector<8x64xbf16>
    %c0_55 = arith.constant 0 : index
    %c0_56 = arith.constant 0 : index
    %c0_57 = arith.constant 0 : index
    %149 = vector.load %arg12[%c0_55, %c0_56, %c0_57] : memref<1x64x32xbf16, #tpu.memory_space<vmem>>, vector<1x64x32xbf16>
    %150 = vector.shape_cast %149 : vector<1x64x32xbf16> to vector<64x32xbf16>
    %cst_58 = arith.constant dense<0.000000e+00> : vector<8x32xf32>
    %151 = tpu.matmul %148, %150, %cst_58 {dimension_numbers = #tpu.dot_dimension_numbers<[1], [0], [0], [1], [0, 0, 1, 1], [], []>} : vector<8x64xbf16>, vector<64x32xbf16>, vector<8x32xf32> -> vector<8x32xf32>
    %c0_59 = arith.constant 0 : index
    %c0_60 = arith.constant 0 : index
    %c0_61 = arith.constant 0 : index
    %152 = vector.load %arg13[%c0_59, %c0_60, %c0_61] : memref<1x1x32xf32, #tpu.memory_space<vmem>>, vector<1x1x32xf32>
    %153 = vector.shape_cast %152 : vector<1x1x32xf32> to vector<1x32xf32>
    %154 = vector.broadcast %153 : vector<1x32xf32> to vector<8x32xf32>
    %155 = arith.addf %151, %154 : vector<8x32xf32>
    %156 = arith.addf %137, %155 : vector<8x32xf32>
    %c0_62 = arith.constant 0 : index
    %c0_63 = arith.constant 0 : index
    %c0_64 = arith.constant 0 : index
    %157 = vector.load %arg14[%c0_62, %c0_63, %c0_64] : memref<1x1x32xf32, #tpu.memory_space<vmem>>, vector<1x1x32xf32>
    %158 = vector.shape_cast %157 : vector<1x1x32xf32> to vector<1x32xf32>
    %c0_65 = arith.constant 0 : index
    %c0_66 = arith.constant 0 : index
    %c0_67 = arith.constant 0 : index
    %159 = vector.load %arg15[%c0_65, %c0_66, %c0_67] : memref<1x1x32xf32, #tpu.memory_space<vmem>>, vector<1x1x32xf32>
    %160 = vector.shape_cast %159 : vector<1x1x32xf32> to vector<1x32xf32>
    %cst_68 = arith.constant dense<0.000000e+00> : vector<8xf32>
    %161 = vector.multi_reduction <add>, %156, %cst_68 [1] : vector<8x32xf32> to vector<8xf32>
    %162 = vector.shape_cast %161 : vector<8xf32> to vector<8x1xf32>
    %cst_69 = arith.constant 3.200000e+01 : f32
    %163 = vector.broadcast %cst_69 : f32 to vector<8x1xf32>
    %164 = arith.divf %162, %163 : vector<8x1xf32>
    %165 = vector.broadcast %164 : vector<8x1xf32> to vector<8x32xf32>
    %166 = arith.subf %156, %165 : vector<8x32xf32>
    %167 = arith.mulf %166, %166 : vector<8x32xf32>
    %cst_70 = arith.constant dense<0.000000e+00> : vector<8xf32>
    %168 = vector.multi_reduction <add>, %167, %cst_70 [1] : vector<8x32xf32> to vector<8xf32>
    %169 = vector.shape_cast %168 : vector<8xf32> to vector<8x1xf32>
    %cst_71 = arith.constant 3.200000e+01 : f32
    %170 = vector.broadcast %cst_71 : f32 to vector<8x1xf32>
    %171 = arith.divf %169, %170 : vector<8x1xf32>
    %172 = vector.broadcast %164 : vector<8x1xf32> to vector<8x32xf32>
    %173 = arith.subf %156, %172 : vector<8x32xf32>
    %cst_72 = arith.constant 9.99999974E-6 : f32
    %174 = vector.broadcast %cst_72 : f32 to vector<8x1xf32>
    %175 = arith.addf %171, %174 : vector<8x1xf32>
    %176 = math.rsqrt %175 : vector<8x1xf32>
    %177 = vector.broadcast %176 : vector<8x1xf32> to vector<8x32xf32>
    %178 = arith.mulf %173, %177 : vector<8x32xf32>
    %179 = vector.broadcast %158 : vector<1x32xf32> to vector<8x32xf32>
    %180 = arith.mulf %178, %179 : vector<8x32xf32>
    %181 = vector.broadcast %160 : vector<1x32xf32> to vector<8x32xf32>
    %182 = arith.addf %180, %181 : vector<8x32xf32>
    %c0_73 = arith.constant 0 : index
    %c0_74 = arith.constant 0 : index
    %c0_75 = arith.constant 0 : index
    %183 = vector.load %arg16[%c0_73, %c0_74, %c0_75] : memref<1x8x32xf32, #tpu.memory_space<vmem>>, vector<1x8x32xf32>
    %184 = vector.shape_cast %183 : vector<1x8x32xf32> to vector<8x32xf32>
    %185 = vector.shape_cast %182 : vector<8x32xf32> to vector<1x8x32xf32>
    tpu.vector_store %arg16[%c0_73, %c0_74, %c0_75], %185 {strides = array<i32>} : memref<1x8x32xf32, #tpu.memory_space<vmem>>, vector<1x8x32xf32>,
    return
  }
  func.func @transform_0(%arg0: i32, %arg1: i32) -> (i32, i32, i32) {
    %c0_i32 = arith.constant 0 : i32
    %c0_i32_0 = arith.constant 0 : i32
    %c0_i32_1 = arith.constant 0 : i32
    return %arg0, %c0_i32, %c0_i32_0 : i32, i32, i32
  }
  func.func @transform_1(%arg0: i32, %arg1: i32) -> (i32, i32, i32) {
    %c0_i32 = arith.constant 0 : i32
    %c0_i32_0 = arith.constant 0 : i32
    %c0_i32_1 = arith.constant 0 : i32
    return %arg0, %c0_i32, %c0_i32_0 : i32, i32, i32
  }
  func.func @transform_2(%arg0: i32, %arg1: i32) -> (i32, i32, i32) {
    %c0_i32 = arith.constant 0 : i32
    %c0_i32_0 = arith.constant 0 : i32
    %c0_i32_1 = arith.constant 0 : i32
    return %arg1, %c0_i32, %c0_i32_0 : i32, i32, i32
  }
  func.func @transform_3(%arg0: i32, %arg1: i32) -> (i32, i32, i32) {
    %c0_i32 = arith.constant 0 : i32
    %c0_i32_0 = arith.constant 0 : i32
    %c0_i32_1 = arith.constant 0 : i32
    return %arg1, %c0_i32, %c0_i32_0 : i32, i32, i32
  }
  func.func @transform_4(%arg0: i32, %arg1: i32) -> (i32, i32, i32) {
    %c0_i32 = arith.constant 0 : i32
    %c0_i32_0 = arith.constant 0 : i32
    %c0_i32_1 = arith.constant 0 : i32
    return %arg1, %c0_i32, %c0_i32_0 : i32, i32, i32
  }
  func.func @transform_5(%arg0: i32, %arg1: i32) -> (i32, i32, i32) {
    %c0_i32 = arith.constant 0 : i32
    %c0_i32_0 = arith.constant 0 : i32
    %c0_i32_1 = arith.constant 0 : i32
    return %arg1, %c0_i32, %c0_i32_0 : i32, i32, i32
  }
  func.func @transform_6(%arg0: i32, %arg1: i32) -> (i32, i32, i32) {
    %c0_i32 = arith.constant 0 : i32
    %c0_i32_0 = arith.constant 0 : i32
    %c0_i32_1 = arith.constant 0 : i32
    return %arg1, %c0_i32, %c0_i32_0 : i32, i32, i32
  }
  func.func @transform_7(%arg0: i32, %arg1: i32) -> (i32, i32, i32) {
    %c0_i32 = arith.constant 0 : i32
    %c0_i32_0 = arith.constant 0 : i32
    %c0_i32_1 = arith.constant 0 : i32
    return %arg1, %c0_i32, %c0_i32_0 : i32, i32, i32
  }
  func.func @transform_8(%arg0: i32, %arg1: i32) -> (i32, i32, i32) {
    %c0_i32 = arith.constant 0 : i32
    %c0_i32_0 = arith.constant 0 : i32
    %c0_i32_1 = arith.constant 0 : i32
    return %arg1, %c0_i32, %c0_i32_0 : i32, i32, i32
  }
  func.func @transform_9(%arg0: i32, %arg1: i32) -> (i32, i32, i32) {
    %c0_i32 = arith.constant 0 : i32
    %c0_i32_0 = arith.constant 0 : i32
    %c0_i32_1 = arith.constant 0 : i32
    return %arg1, %c0_i32, %c0_i32_0 : i32, i32, i32
  }
  func.func @transform_10(%arg0: i32, %arg1: i32) -> (i32, i32, i32) {
    %c0_i32 = arith.constant 0 : i32
    %c0_i32_0 = arith.constant 0 : i32
    %c0_i32_1 = arith.constant 0 : i32
    return %arg1, %c0_i32, %c0_i32_0 : i32, i32, i32
  }
  func.func @transform_11(%arg0: i32, %arg1: i32) -> (i32, i32, i32) {
    %c0_i32 = arith.constant 0 : i32
    %c0_i32_0 = arith.constant 0 : i32
    %c0_i32_1 = arith.constant 0 : i32
    return %arg1, %c0_i32, %c0_i32_0 : i32, i32, i32
  }
  func.func @transform_12(%arg0: i32, %arg1: i32) -> (i32, i32, i32) {
    %c0_i32 = arith.constant 0 : i32
    %c0_i32_0 = arith.constant 0 : i32
    %c0_i32_1 = arith.constant 0 : i32
    return %arg1, %c0_i32, %c0_i32_0 : i32, i32, i32
  }
  func.func @transform_13(%arg0: i32, %arg1: i32) -> (i32, i32, i32) {
    %c0_i32 = arith.constant 0 : i32
    %c0_i32_0 = arith.constant 0 : i32
    %c0_i32_1 = arith.constant 0 : i32
    return %arg1, %c0_i32, %c0_i32_0 : i32, i32, i32
  }
  func.func @transform_14(%arg0: i32, %arg1: i32) -> (i32, i32, i32) {
    %c0_i32 = arith.constant 0 : i32
    %c0_i32_0 = arith.constant 0 : i32
    %c0_i32_1 = arith.constant 0 : i32
    return %arg0, %c0_i32, %c0_i32_0 : i32, i32, i32
  }
}

</mosaic_0001>

<llo_original>
// kernel: tpu_custom_call.1
$region0: #{tpu_custom_call.1}
  #allocation0 [shape = 'u32[]', space=smem, size = 0x4, offset = 0x4, fixed_abs, tag = 'smem constant byte address 0x4 - core index']
  #allocation1 [shape = 'u32[144,128]{1,0:T(1,128)}', space=vmem, size = 0x12000, scoped, tag = 'internal scratch']
  %s0 = inlined_call_operand.hbm [shape: f32[2,8,32], index: 0, kind: input, shape index: {}]
  %s1 = inlined_call_operand.hbm [shape: f32[2,1,8], index: 1, kind: input, shape index: {}]
  %s2 = inlined_call_operand.vmem [shape: bf16[2,32,96], index: 2, kind: input, shape index: {}]
  %s3 = inlined_call_operand.vmem [shape: f32[2,1,96], index: 3, kind: input, shape index: {}]
  %s4 = inlined_call_operand.vmem [shape: bf16[2,32,32], index: 4, kind: input, shape index: {}]
  %s5 = inlined_call_operand.vmem [shape: f32[2,1,32], index: 5, kind: input, shape index: {}]
  %s6 = inlined_call_operand.vmem [shape: f32[2,1,32], index: 6, kind: input, shape index: {}]
  %s7 = inlined_call_operand.vmem [shape: f32[2,1,32], index: 7, kind: input, shape index: {}]
  %s8 = inlined_call_operand.vmem [shape: bf16[2,32,64], index: 8, kind: input, shape index: {}]
  %s9 = inlined_call_operand.vmem [shape: f32[2,1,64], index: 9, kind: input, shape index: {}]
  %s10 = inlined_call_operand.vmem [shape: bf16[2,64,32], index: 10, kind: input, shape index: {}]
  %s11 = inlined_call_operand.vmem [shape: f32[2,1,32], index: 11, kind: input, shape index: {}]
  %s12 = inlined_call_operand.vmem [shape: f32[2,1,32], index: 12, kind: input, shape index: {}]
  %s13 = inlined_call_operand.vmem [shape: f32[2,1,32], index: 13, kind: input, shape index: {}]
  %s14 = inlined_call_operand.hbm [shape: f32[2,8,32], index: 14, kind: output, shape index: {}]
  %s15 = sld [smem:[#allocation0]]
  $region101: #{tpu_custom_call.1} parent=0
    _
  %s17 = ssub.s32 1, %s15
  %s18 = scalar_select 0, %s17, %s15
  $region1: #{tpu_custom_call.1} parent=0
    #allocation2 [shape = 'u8[8192]{0}', space=vmem, size = 0x2000, scoped, tag = 'input window, operand 0']
    #allocation3 [shape = 's32[2]{0}', space=sflag, size = 0x8, scoped, tag = 'scoped memory for tpu_custom_call.1']
    #allocation4 [shape = 's32[2]{0}', space=sflag, size = 0x8, scoped, tag = 'scoped memory for tpu_custom_call.1']
    #allocation5 [shape = 'u8[1024]{0}', space=vmem, size = 0x400, scoped, tag = 'input window, operand 1']
    #allocation6 [shape = 's32[2]{0}', space=sflag, size = 0x8, scoped, tag = 'scoped memory for tpu_custom_call.1']
    #allocation7 [shape = 'u8[8192]{0}', space=vmem, size = 0x2000, scoped, tag = 'output window, operand 0']
    %19 = vsyncpa [#allocation3], 0
    %s20 = scalar_lea.sflag [#allocation3], 1
    %21 = vsyncpa %s20, 0
    %22 = vsyncpa [#allocation6], 0
    %s23 = scalar_lea.sflag [#allocation6], 1
    %24 = vsyncpa %s23, 0
    %25 = vsyncpa [#allocation4], 0
    %s26 = scalar_lea.sflag [#allocation4], 1
    %27 = vsyncpa %s26, 0
    loop: start=0, step=1, limit=6
    $region2: #{tpu_custom_call.1} parent=1 // loop_pre_header
      _
    $region3: #{tpu_custom_call.1} parent=1 // loop_header
      %s29 = sphi 0, %s33
      %p30 = scmp.ge.s32.totalorder %s29, 6
      %s36 = sphi 0, %s48
      %s37 = sphi 0, %s44
      %s38 = sphi 0, %s36
      %s39 = sphi 0, %s37
      %s40 = sphi 0, %s38
      %s41 = sphi 0, %s39
      %s51 = sphi 0, %s53
      %s54 = sphi 0, %s51
      %s55 = sphi 0, %s54
      %s71 = sphi 0, %s55
      %s77 = sphi 0, %s79
      %s80 = sphi 0, %s77
      %s81 = sphi 0, %s80
      %s97 = sphi 0, %s81
      %s103 = sphi 0, %s105
      %s106 = sphi 0, %s103
      %s107 = sphi 0, %s106
      %s123 = sphi 0, %s107
      %s129 = sphi 0, %s131
      %s132 = sphi 0, %s129
      %s133 = sphi 0, %s132
      %s149 = sphi 0, %s133
      %s155 = sphi 0, %s157
      %s158 = sphi 0, %s155
      %s159 = sphi 0, %s158
      %s175 = sphi 0, %s159
      %s181 = sphi 0, %s183
      %s184 = sphi 0, %s181
      %s185 = sphi 0, %s184
      %s201 = sphi 0, %s185
      %s207 = sphi 0, %s209
      %s210 = sphi 0, %s207
      %s211 = sphi 0, %s210
      %s227 = sphi 0, %s211
      %s233 = sphi 0, %s235
      %s236 = sphi 0, %s233
      %s237 = sphi 0, %s236
      %s253 = sphi 0, %s237
      %s259 = sphi 0, %s261
      %s262 = sphi 0, %s259
      %s263 = sphi 0, %s262
      %s279 = sphi 0, %s263
      %s285 = sphi 0, %s287
      %s288 = sphi 0, %s285
      %s289 = sphi 0, %s288
      %s305 = sphi 0, %s289
      %s311 = sphi 0, %s313
      %s314 = sphi 0, %s311
      %s315 = sphi 0, %s314
      %s331 = sphi 0, %s315
      %s337 = sphi 0, %s339
      %s340 = sphi 0, %s337
      %s341 = sphi 0, %s340
      %s357 = sphi 0, %s341
      %s363 = sphi 0, %s365
      %s366 = sphi 0, %s363
      %s367 = sphi 0, %s366
      %s383 = sphi 0, %s367
      %s389 = sphi 0, %s391
      %s392 = sphi 0, %s389
      %s393 = sphi 0, %s392
      %s409 = sphi 0, %s393
      %s415 = sphi 0, %s417
      %s418 = sphi 0, %s415
      %s419 = sphi 0, %s418
      %s435 = sphi 0, %s419
    $region4: #{tpu_custom_call.1} parent=1 // loop_header_branch
      %32 = sbr.rel (%p30) target = $region8
    $region5: #{tpu_custom_call.1} parent=1 // loop_body
      %s34 = ssub.s32 %s29, 1
      %s35 = ssub.s32 %s29, 2
      %s42 = sadd.s32 1, %s37
      %p43 = scmp.ge.s32.totalorder %s42, 2
      %s44 = scalar_select %p43, 0, %s42
      %s45 = sadd.s32 1, %s36
      %s46 = scalar_select %p43, %s45, %s36
      %p47 = scmp.ge.s32.totalorder %s46, 2
      %s48 = scalar_select %p47, 0, %s46
      %s49 = ssub.s32 %s36, %s48
      %p50 = scmp.eq.s32.totalorder %s49, 0
      %s52 = sadd.s32 %s51, 1
      %s53 = scalar_select %p50, %s51, %s52
      %p56 = pneg %p50
      %p57 = scmp.eq.s32.totalorder %s29, 3
      %p58 = por %p56, %p57
      %p59 = scmp.ne.s32.totalorder %s51, %s54
      %p60 = scmp.eq.s32.totalorder %s29, 0
      %p61 = por %p59, %p60
      %p62 = scmp.ne.s32.totalorder %s51, %s54
      %p63 = scmp.eq.s32.totalorder %s34, 3
      %p64 = por %p62, %p63
      %p65 = scmp.ne.s32.totalorder %s54, %s55
      %p66 = scmp.eq.s32.totalorder %s34, 0
      %p67 = por %p65, %p66
      %p68 = scmp.ne.s32.totalorder %s54, %s55
      %p69 = scmp.eq.s32.totalorder %s35, 3
      %p70 = por %p68, %p69
      %p72 = scmp.ne.s32.totalorder %s55, %s71
      %p73 = scmp.eq.s32.totalorder %s35, 0
      %p74 = por %p72, %p73
      %s75 = ssub.s32 %s36, %s48
      %p76 = scmp.eq.s32.totalorder %s75, 0
      %s78 = sadd.s32 %s77, 1
      %s79 = scalar_select %p76, %s77, %s78
      %p82 = pneg %p76
      %p83 = scmp.eq.s32.totalorder %s29, 3
      %p84 = por %p82, %p83
      %p85 = scmp.ne.s32.totalorder %s77, %s80
      %p86 = scmp.eq.s32.totalorder %s29, 0
      %p87 = por %p85, %p86
      %p88 = scmp.ne.s32.totalorder %s77, %s80
      %p89 = scmp.eq.s32.totalorder %s34, 3
      %p90 = por %p88, %p89
      %p91 = scmp.ne.s32.totalorder %s80, %s81
      %p92 = scmp.eq.s32.totalorder %s34, 0
      %p93 = por %p91, %p92
      %p94 = scmp.ne.s32.totalorder %s80, %s81
      %p95 = scmp.eq.s32.totalorder %s35, 3
      %p96 = por %p94, %p95
      %p98 = scmp.ne.s32.totalorder %s81, %s97
      %p99 = scmp.eq.s32.totalorder %s35, 0
      %p100 = por %p98, %p99
      %s101 = ssub.s32 %s37, %s44
      %p102 = scmp.eq.s32.totalorder %s101, 0
      %s104 = sadd.s32 %s103, 1
      %s105 = scalar_select %p102, %s103, %s104
      %p108 = pneg %p102
      %p109 = scmp.eq.s32.totalorder %s29, 3
      %p110 = por %p108, %p109
      %p111 = scmp.ne.s32.totalorder %s103, %s106
      %p112 = scmp.eq.s32.totalorder %s29, 0
      %p113 = por %p111, %p112
      %p114 = scmp.ne.s32.totalorder %s103, %s106
      %p115 = scmp.eq.s32.totalorder %s34, 3
      %p116 = por %p114, %p115
      %p117 = scmp.ne.s32.totalorder %s106, %s107
      %p118 = scmp.eq.s32.totalorder %s34, 0
      %p119 = por %p117, %p118
      %p120 = scmp.ne.s32.totalorder %s106, %s107
      %p121 = scmp.eq.s32.totalorder %s35, 3
      %p122 = por %p120, %p121
      %p124 = scmp.ne.s32.totalorder %s107, %s123
      %p125 = scmp.eq.s32.totalorder %s35, 0
      %p126 = por %p124, %p125
      %s127 = ssub.s32 %s37, %s44
      %p128 = scmp.eq.s32.totalorder %s127, 0
      %s130 = sadd.s32 %s129, 1
      %s131 = scalar_select %p128, %s129, %s130
      %p134 = pneg %p128
      %p135 = scmp.eq.s32.totalorder %s29, 3
      %p136 = por %p134, %p135
      %p137 = scmp.ne.s32.totalorder %s129, %s132
      %p138 = scmp.eq.s32.totalorder %s29, 0
      %p139 = por %p137, %p138
      %p140 = scmp.ne.s32.totalorder %s129, %s132
      %p141 = scmp.eq.s32.totalorder %s34, 3
      %p142 = por %p140, %p141
      %p143 = scmp.ne.s32.totalorder %s132, %s133
      %p144 = scmp.eq.s32.totalorder %s34, 0
      %p145 = por %p143, %p144
      %p146 = scmp.ne.s32.totalorder %s132, %s133
      %p147 = scmp.eq.s32.totalorder %s35, 3
      %p148 = por %p146, %p147
      %p150 = scmp.ne.s32.totalorder %s133, %s149
      %p151 = scmp.eq.s32.totalorder %s35, 0
      %p152 = por %p150, %p151
      %s153 = ssub.s32 %s37, %s44
      %p154 = scmp.eq.s32.totalorder %s153, 0
      %s156 = sadd.s32 %s155, 1
      %s157 = scalar_select %p154, %s155, %s156
      %p160 = pneg %p154
      %p161 = scmp.eq.s32.totalorder %s29, 3
      %p162 = por %p160, %p161
      %p163 = scmp.ne.s32.totalorder %s155, %s158
      %p164 = scmp.eq.s32.totalorder %s29, 0
      %p165 = por %p163, %p164
      %p166 = scmp.ne.s32.totalorder %s155, %s158
      %p167 = scmp.eq.s32.totalorder %s34, 3
      %p168 = por %p166, %p167
      %p169 = scmp.ne.s32.totalorder %s158, %s159
      %p170 = scmp.eq.s32.totalorder %s34, 0
      %p171 = por %p169, %p170
      %p172 = scmp.ne.s32.totalorder %s158, %s159
      %p173 = scmp.eq.s32.totalorder %s35, 3
      %p174 = por %p172, %p173
      %p176 = scmp.ne.s32.totalorder %s159, %s175
      %p177 = scmp.eq.s32.totalorder %s35, 0
      %p178 = por %p176, %p177
      %s179 = ssub.s32 %s37, %s44
      %p180 = scmp.eq.s32.totalorder %s179, 0
      %s182 = sadd.s32 %s181, 1
      %s183 = scalar_select %p180, %s181, %s182
      %p186 = pneg %p180
      %p187 = scmp.eq.s32.totalorder %s29, 3
      %p188 = por %p186, %p187
      %p189 = scmp.ne.s32.totalorder %s181, %s184
      %p190 = scmp.eq.s32.totalorder %s29, 0
      %p191 = por %p189, %p190
      %p192 = scmp.ne.s32.totalorder %s181, %s184
      %p193 = scmp.eq.s32.totalorder %s34, 3
      %p194 = por %p192, %p193
      %p195 = scmp.ne.s32.totalorder %s184, %s185
      %p196 = scmp.eq.s32.totalorder %s34, 0
      %p197 = por %p195, %p196
      %p198 = scmp.ne.s32.totalorder %s184, %s185
      %p199 = scmp.eq.s32.totalorder %s35, 3
      %p200 = por %p198, %p199
      %p202 = scmp.ne.s32.totalorder %s185, %s201
      %p203 = scmp.eq.s32.totalorder %s35, 0
      %p204 = por %p202, %p203
      %s205 = ssub.s32 %s37, %s44
      %p206 = scmp.eq.s32.totalorder %s205, 0
      %s208 = sadd.s32 %s207, 1
      %s209 = scalar_select %p206, %s207, %s208
      %p212 = pneg %p206
      %p213 = scmp.eq.s32.totalorder %s29, 3
      %p214 = por %p212, %p213
      %p215 = scmp.ne.s32.totalorder %s207, %s210
      %p216 = scmp.eq.s32.totalorder %s29, 0
      %p217 = por %p215, %p216
      %p218 = scmp.ne.s32.totalorder %s207, %s210
      %p219 = scmp.eq.s32.totalorder %s34, 3
      %p220 = por %p218, %p219
      %p221 = scmp.ne.s32.totalorder %s210, %s211
      %p222 = scmp.eq.s32.totalorder %s34, 0
      %p223 = por %p221, %p222
      %p224 = scmp.ne.s32.totalorder %s210, %s211
      %p225 = scmp.eq.s32.totalorder %s35, 3
      %p226 = por %p224, %p225
      %p228 = scmp.ne.s32.totalorder %s211, %s227
      %p229 = scmp.eq.s32.totalorder %s35, 0
      %p230 = por %p228, %p229
      %s231 = ssub.s32 %s37, %s44
      %p232 = scmp.eq.s32.totalorder %s231, 0
      %s234 = sadd.s32 %s233, 1
      %s235 = scalar_select %p232, %s233, %s234
      %p238 = pneg %p232
      %p239 = scmp.eq.s32.totalorder %s29, 3
      %p240 = por %p238, %p239
      %p241 = scmp.ne.s32.totalorder %s233, %s236
      %p242 = scmp.eq.s32.totalorder %s29, 0
      %p243 = por %p241, %p242
      %p244 = scmp.ne.s32.totalorder %s233, %s236
      %p245 = scmp.eq.s32.totalorder %s34, 3
      %p246 = por %p244, %p245
      %p247 = scmp.ne.s32.totalorder %s236, %s237
      %p248 = scmp.eq.s32.totalorder %s34, 0
      %p249 = por %p247, %p248
      %p250 = scmp.ne.s32.totalorder %s236, %s237
      %p251 = scmp.eq.s32.totalorder %s35, 3
      %p252 = por %p250, %p251
      %p254 = scmp.ne.s32.totalorder %s237, %s253
      %p255 = scmp.eq.s32.totalorder %s35, 0
      %p256 = por %p254, %p255
      %s257 = ssub.s32 %s37, %s44
      %p258 = scmp.eq.s32.totalorder %s257, 0
      %s260 = sadd.s32 %s259, 1
      %s261 = scalar_select %p258, %s259, %s260
      %p264 = pneg %p258
      %p265 = scmp.eq.s32.totalorder %s29, 3
      %p266 = por %p264, %p265
      %p267 = scmp.ne.s32.totalorder %s259, %s262
      %p268 = scmp.eq.s32.totalorder %s29, 0
      %p269 = por %p267, %p268
      %p270 = scmp.ne.s32.totalorder %s259, %s262
      %p271 = scmp.eq.s32.totalorder %s34, 3
      %p272 = por %p270, %p271
      %p273 = scmp.ne.s32.totalorder %s262, %s263
      %p274 = scmp.eq.s32.totalorder %s34, 0
      %p275 = por %p273, %p274
      %p276 = scmp.ne.s32.totalorder %s262, %s263
      %p277 = scmp.eq.s32.totalorder %s35, 3
      %p278 = por %p276, %p277
      %p280 = scmp.ne.s32.totalorder %s263, %s279
      %p281 = scmp.eq.s32.totalorder %s35, 0
      %p282 = por %p280, %p281
      %s283 = ssub.s32 %s37, %s44
      %p284 = scmp.eq.s32.totalorder %s283, 0
      %s286 = sadd.s32 %s285, 1
      %s287 = scalar_select %p284, %s285, %s286
      %p290 = pneg %p284
      %p291 = scmp.eq.s32.totalorder %s29, 3
      %p292 = por %p290, %p291
      %p293 = scmp.ne.s32.totalorder %s285, %s288
      %p294 = scmp.eq.s32.totalorder %s29, 0
      %p295 = por %p293, %p294
      %p296 = scmp.ne.s32.totalorder %s285, %s288
      %p297 = scmp.eq.s32.totalorder %s34, 3
      %p298 = por %p296, %p297
      %p299 = scmp.ne.s32.totalorder %s288, %s289
      %p300 = scmp.eq.s32.totalorder %s34, 0
      %p301 = por %p299, %p300
      %p302 = scmp.ne.s32.totalorder %s288, %s289
      %p303 = scmp.eq.s32.totalorder %s35, 3
      %p304 = por %p302, %p303
      %p306 = scmp.ne.s32.totalorder %s289, %s305
      %p307 = scmp.eq.s32.totalorder %s35, 0
      %p308 = por %p306, %p307
      %s309 = ssub.s32 %s37, %s44
      %p310 = scmp.eq.s32.totalorder %s309, 0
      %s312 = sadd.s32 %s311, 1
      %s313 = scalar_select %p310, %s311, %s312
      %p316 = pneg %p310
      %p317 = scmp.eq.s32.totalorder %s29, 3
      %p318 = por %p316, %p317
      %p319 = scmp.ne.s32.totalorder %s311, %s314
      %p320 = scmp.eq.s32.totalorder %s29, 0
      %p321 = por %p319, %p320
      %p322 = scmp.ne.s32.totalorder %s311, %s314
      %p323 = scmp.eq.s32.totalorder %s34, 3
      %p324 = por %p322, %p323
      %p325 = scmp.ne.s32.totalorder %s314, %s315
      %p326 = scmp.eq.s32.totalorder %s34, 0
      %p327 = por %p325, %p326
      %p328 = scmp.ne.s32.totalorder %s314, %s315
      %p329 = scmp.eq.s32.totalorder %s35, 3
      %p330 = por %p328, %p329
      %p332 = scmp.ne.s32.totalorder %s315, %s331
      %p333 = scmp.eq.s32.totalorder %s35, 0
      %p334 = por %p332, %p333
      %s335 = ssub.s32 %s37, %s44
      %p336 = scmp.eq.s32.totalorder %s335, 0
      %s338 = sadd.s32 %s337, 1
      %s339 = scalar_select %p336, %s337, %s338
      %p342 = pneg %p336
      %p343 = scmp.eq.s32.totalorder %s29, 3
      %p344 = por %p342, %p343
      %p345 = scmp.ne.s32.totalorder %s337, %s340
      %p346 = scmp.eq.s32.totalorder %s29, 0
      %p347 = por %p345, %p346
      %p348 = scmp.ne.s32.totalorder %s337, %s340
      %p349 = scmp.eq.s32.totalorder %s34, 3
      %p350 = por %p348, %p349
      %p351 = scmp.ne.s32.totalorder %s340, %s341
      %p352 = scmp.eq.s32.totalorder %s34, 0
      %p353 = por %p351, %p352
      %p354 = scmp.ne.s32.totalorder %s340, %s341
      %p355 = scmp.eq.s32.totalorder %s35, 3
      %p356 = por %p354, %p355
      %p358 = scmp.ne.s32.totalorder %s341, %s357
      %p359 = scmp.eq.s32.totalorder %s35, 0
      %p360 = por %p358, %p359
      %s361 = ssub.s32 %s37, %s44
      %p362 = scmp.eq.s32.totalorder %s361, 0
      %s364 = sadd.s32 %s363, 1
      %s365 = scalar_select %p362, %s363, %s364
      %p368 = pneg %p362
      %p369 = scmp.eq.s32.totalorder %s29, 3
      %p370 = por %p368, %p369
      %p371 = scmp.ne.s32.totalorder %s363, %s366
      %p372 = scmp.eq.s32.totalorder %s29, 0
      %p373 = por %p371, %p372
      %p374 = scmp.ne.s32.totalorder %s363, %s366
      %p375 = scmp.eq.s32.totalorder %s34, 3
      %p376 = por %p374, %p375
      %p377 = scmp.ne.s32.totalorder %s366, %s367
      %p378 = scmp.eq.s32.totalorder %s34, 0
      %p379 = por %p377, %p378
      %p380 = scmp.ne.s32.totalorder %s366, %s367
      %p381 = scmp.eq.s32.totalorder %s35, 3
      %p382 = por %p380, %p381
      %p384 = scmp.ne.s32.totalorder %s367, %s383
      %p385 = scmp.eq.s32.totalorder %s35, 0
      %p386 = por %p384, %p385
      %s387 = ssub.s32 %s37, %s44
      %p388 = scmp.eq.s32.totalorder %s387, 0
      %s390 = sadd.s32 %s389, 1
      %s391 = scalar_select %p388, %s389, %s390
      %p394 = pneg %p388
      %p395 = scmp.eq.s32.totalorder %s29, 3
      %p396 = por %p394, %p395
      %p397 = scmp.ne.s32.totalorder %s389, %s392
      %p398 = scmp.eq.s32.totalorder %s29, 0
      %p399 = por %p397, %p398
      %p400 = scmp.ne.s32.totalorder %s389, %s392
      %p401 = scmp.eq.s32.totalorder %s34, 3
      %p402 = por %p400, %p401
      %p403 = scmp.ne.s32.totalorder %s392, %s393
      %p404 = scmp.eq.s32.totalorder %s34, 0
      %p405 = por %p403, %p404
      %p406 = scmp.ne.s32.totalorder %s392, %s393
      %p407 = scmp.eq.s32.totalorder %s35, 3
      %p408 = por %p406, %p407
      %p410 = scmp.ne.s32.totalorder %s393, %s409
      %p411 = scmp.eq.s32.totalorder %s35, 0
      %p412 = por %p410, %p411
      %s413 = ssub.s32 %s36, %s48
      %p414 = scmp.eq.s32.totalorder %s413, 0
      %s416 = sadd.s32 %s415, 1
      %s417 = scalar_select %p414, %s415, %s416
      %p420 = pneg %p414
      %p421 = scmp.eq.s32.totalorder %s29, 3
      %p422 = por %p420, %p421
      %p423 = scmp.ne.s32.totalorder %s415, %s418
      %p424 = scmp.eq.s32.totalorder %s29, 0
      %p425 = por %p423, %p424
      %p426 = scmp.ne.s32.totalorder %s415, %s418
      %p427 = scmp.eq.s32.totalorder %s34, 3
      %p428 = por %p426, %p427
      %p429 = scmp.ne.s32.totalorder %s418, %s419
      %p430 = scmp.eq.s32.totalorder %s34, 0
      %p431 = por %p429, %p430
      %p432 = scmp.ne.s32.totalorder %s418, %s419
      %p433 = scmp.eq.s32.totalorder %s35, 3
      %p434 = por %p432, %p433
      %p436 = scmp.ne.s32.totalorder %s419, %s435
      %p437 = scmp.eq.s32.totalorder %s35, 0
      %p438 = por %p436, %p437
      %p439 = scmp.le.s32.totalorder 1, %s29
      %p440 = scmp.lt.s32.totalorder %s29, 5
      %p441 = pnand %p439, %p440
      %p442 = pneg %p441
      // Predicated region
      $region9: #{tpu_custom_call.1} parent=5 // pred_check
        _
      $region10: #{tpu_custom_call.1} parent=5 // pred_check_branch
        %444 = sbr.rel (%p441) target = $region12
      $region11: #{tpu_custom_call.1} parent=5 // pred_region
        %s445 = ssub.s32 %s29, 1
      $region12: #{tpu_custom_call.1} parent=5 // pred_fallthru
        _
      %p446 = scmp.lt.s32.totalorder %s29, 4
      // Predicated region
      $region13: #{tpu_custom_call.1} parent=5 // pred_check
        %p447 = pneg %p446
      $region14: #{tpu_custom_call.1} parent=5 // pred_check_branch
        %449 = sbr.rel (%p447) target = $region16
      $region15: #{tpu_custom_call.1} parent=5 // pred_region
        // Predicated region
        $region17: #{tpu_custom_call.1} parent=15 // pred_check
          %p450 = pneg %p61
        $region18: #{tpu_custom_call.1} parent=15 // pred_check_branch
          %452 = sbr.rel (%p450) target = $region20
        $region19: #{tpu_custom_call.1} parent=15 // pred_region
          %s453 = sand.u32 %s51, 1
          %s454 = scalar_lea.sflag [#allocation3], %s453
          %s455 = sand.u32 %s51, 1
          %s456 = smul.addr %s455, 8
          %s457 = scalar_lea.vmem [#allocation2], %s456
          %s459 = ssub.s32 128, 128
          %460 = vsyncadd %s454, %s459
          %s461 = smul.addr %s36, 128
          %s462 = scalar_lea.hbm %s0, %s461
          %s464 = sshll.u32 %s457, 4
          %s465 = int_to_ptr.vmem [resolvable:$true] %s464
          %467 = dma.hbm_to_vmem [thread:$0]  %s462, 128, %s465, %s454
        $region20: #{tpu_custom_call.1} parent=15 // pred_fallthru
          _
        // Predicated region
        $region21: #{tpu_custom_call.1} parent=15 // pred_check
          %p468 = pneg %p87
        $region22: #{tpu_custom_call.1} parent=15 // pred_check_branch
          %470 = sbr.rel (%p468) target = $region24
        $region23: #{tpu_custom_call.1} parent=15 // pred_region
          %s471 = sand.u32 %s77, 1
          %s472 = scalar_lea.sflag [#allocation6], %s471
          %s473 = sand.u32 %s77, 1
          %s474 = scalar_lea.vmem [#allocation5], %s473
          %s476 = ssub.s32 16, 16
          %477 = vsyncadd %s472, %s476
          %s478 = smul.addr %s36, 16
          %s479 = scalar_lea.hbm %s1, %s478
          %s481 = sshll.u32 %s474, 4
          %s482 = int_to_ptr.vmem [resolvable:$true] %s481
          %484 = dma.hbm_to_vmem [thread:$0]  %s479, 16, %s482, %s472
        $region24: #{tpu_custom_call.1} parent=15 // pred_fallthru
          _
        // Predicated region
        $region25: #{tpu_custom_call.1} parent=15 // pred_check
          %p485 = pneg %p113
        $region26: #{tpu_custom_call.1} parent=15 // pred_check_branch
          %487 = sbr.rel (%p485) target = $region28
        $region27: #{tpu_custom_call.1} parent=15 // pred_region
          %p488 = scmp.lt.s32.totalorder %s37, 1
          %s489 = scalar_select %p488, %s37, 1
          %s490 = smul.addr %s489, 4
          %s491 = smul.addr %s490, 4
          %s492 = scalar_lea.vmem %s2, %s491
        $region28: #{tpu_custom_call.1} parent=15 // pred_fallthru
          _
        // Predicated region
        $region29: #{tpu_custom_call.1} parent=15 // pred_check
          %p493 = pneg %p139
        $region30: #{tpu_custom_call.1} parent=15 // pred_check_branch
          %495 = sbr.rel (%p493) target = $region32
        $region31: #{tpu_custom_call.1} parent=15 // pred_region
          %p496 = scmp.lt.s32.totalorder %s37, 1
          %s497 = scalar_select %p496, %s37, 1
          %s498 = scalar_lea.vmem %s3, %s497
        $region32: #{tpu_custom_call.1} parent=15 // pred_fallthru
          _
        // Predicated region
        $region33: #{tpu_custom_call.1} parent=15 // pred_check
          %p499 = pneg %p165
        $region34: #{tpu_custom_call.1} parent=15 // pred_check_branch
          %501 = sbr.rel (%p499) target = $region36
        $region35: #{tpu_custom_call.1} parent=15 // pred_region
          %p502 = scmp.lt.s32.totalorder %s37, 1
          %s503 = scalar_select %p502, %s37, 1
          %s504 = smul.addr %s503, 4
          %s505 = smul.addr %s504, 4
          %s506 = scalar_lea.vmem %s4, %s505
        $region36: #{tpu_custom_call.1} parent=15 // pred_fallthru
          _
        // Predicated region
        $region37: #{tpu_custom_call.1} parent=15 // pred_check
          %p507 = pneg %p191
        $region38: #{tpu_custom_call.1} parent=15 // pred_check_branch
          %509 = sbr.rel (%p507) target = $region40
        $region39: #{tpu_custom_call.1} parent=15 // pred_region
          %p510 = scmp.lt.s32.totalorder %s37, 1
          %s511 = scalar_select %p510, %s37, 1
          %s512 = scalar_lea.vmem %s5, %s511
        $region40: #{tpu_custom_call.1} parent=15 // pred_fallthru
          _
        // Predicated region
        $region41: #{tpu_custom_call.1} parent=15 // pred_check
          %p513 = pneg %p217
        $region42: #{tpu_custom_call.1} parent=15 // pred_check_branch
          %515 = sbr.rel (%p513) target = $region44
        $region43: #{tpu_custom_call.1} parent=15 // pred_region
          %p516 = scmp.lt.s32.totalorder %s37, 1
          %s517 = scalar_select %p516, %s37, 1
          %s518 = scalar_lea.vmem %s6, %s517
        $region44: #{tpu_custom_call.1} parent=15 // pred_fallthru
          _
        // Predicated region
        $region45: #{tpu_custom_call.1} parent=15 // pred_check
          %p519 = pneg %p243
        $region46: #{tpu_custom_call.1} parent=15 // pred_check_branch
          %521 = sbr.rel (%p519) target = $region48
        $region47: #{tpu_custom_call.1} parent=15 // pred_region
          %p522 = scmp.lt.s32.totalorder %s37, 1
          %s523 = scalar_select %p522, %s37, 1
          %s524 = scalar_lea.vmem %s7, %s523
        $region48: #{tpu_custom_call.1} parent=15 // pred_fallthru
          _
        // Predicated region
        $region49: #{tpu_custom_call.1} parent=15 // pred_check
          %p525 = pneg %p269
        $region50: #{tpu_custom_call.1} parent=15 // pred_check_branch
          %527 = sbr.rel (%p525) target = $region52
        $region51: #{tpu_custom_call.1} parent=15 // pred_region
          %p528 = scmp.lt.s32.totalorder %s37, 1
          %s529 = scalar_select %p528, %s37, 1
          %s530 = smul.addr %s529, 4
          %s531 = smul.addr %s530, 4
          %s532 = scalar_lea.vmem %s8, %s531
        $region52: #{tpu_custom_call.1} parent=15 // pred_fallthru
          _
        // Predicated region
        $region53: #{tpu_custom_call.1} parent=15 // pred_check
          %p533 = pneg %p295
        $region54: #{tpu_custom_call.1} parent=15 // pred_check_branch
          %535 = sbr.rel (%p533) target = $region56
        $region55: #{tpu_custom_call.1} parent=15 // pred_region
          %p536 = scmp.lt.s32.totalorder %s37, 1
          %s537 = scalar_select %p536, %s37, 1
          %s538 = scalar_lea.vmem %s9, %s537
        $region56: #{tpu_custom_call.1} parent=15 // pred_fallthru
          _
        // Predicated region
        $region57: #{tpu_custom_call.1} parent=15 // pred_check
          %p539 = pneg %p321
        $region58: #{tpu_custom_call.1} parent=15 // pred_check_branch
          %541 = sbr.rel (%p539) target = $region60
        $region59: #{tpu_custom_call.1} parent=15 // pred_region
          %p542 = scmp.lt.s32.totalorder %s37, 1
          %s543 = scalar_select %p542, %s37, 1
          %s544 = smul.addr %s543, 8
          %s545 = smul.addr %s544, 4
          %s546 = scalar_lea.vmem %s10, %s545
        $region60: #{tpu_custom_call.1} parent=15 // pred_fallthru
          _
        // Predicated region
        $region61: #{tpu_custom_call.1} parent=15 // pred_check
          %p547 = pneg %p347
        $region62: #{tpu_custom_call.1} parent=15 // pred_check_branch
          %549 = sbr.rel (%p547) target = $region64
        $region63: #{tpu_custom_call.1} parent=15 // pred_region
          %p550 = scmp.lt.s32.totalorder %s37, 1
          %s551 = scalar_select %p550, %s37, 1
          %s552 = scalar_lea.vmem %s11, %s551
        $region64: #{tpu_custom_call.1} parent=15 // pred_fallthru
          _
        // Predicated region
        $region65: #{tpu_custom_call.1} parent=15 // pred_check
          %p553 = pneg %p373
        $region66: #{tpu_custom_call.1} parent=15 // pred_check_branch
          %555 = sbr.rel (%p553) target = $region68
        $region67: #{tpu_custom_call.1} parent=15 // pred_region
          %p556 = scmp.lt.s32.totalorder %s37, 1
          %s557 = scalar_select %p556, %s37, 1
          %s558 = scalar_lea.vmem %s12, %s557
        $region68: #{tpu_custom_call.1} parent=15 // pred_fallthru
          _
        // Predicated region
        $region69: #{tpu_custom_call.1} parent=15 // pred_check
          %p559 = pneg %p399
        $region70: #{tpu_custom_call.1} parent=15 // pred_check_branch
          %561 = sbr.rel (%p559) target = $region72
        $region71: #{tpu_custom_call.1} parent=15 // pred_region
          %p562 = scmp.lt.s32.totalorder %s37, 1
          %s563 = scalar_select %p562, %s37, 1
          %s564 = scalar_lea.vmem %s13, %s563
        $region72: #{tpu_custom_call.1} parent=15 // pred_fallthru
          _
      $region16: #{tpu_custom_call.1} parent=5 // pred_fallthru
        _
      %p565 = scmp.le.s32.totalorder 1, %s29
      %p566 = scmp.lt.s32.totalorder %s29, 5
      %p567 = pnand %p565, %p566
      %p568 = pneg %p567
      // Predicated region
      $region73: #{tpu_custom_call.1} parent=5 // pred_check
        _
      $region74: #{tpu_custom_call.1} parent=5 // pred_check_branch
        %570 = sbr.rel (%p567) target = $region76
      $region75: #{tpu_custom_call.1} parent=5 // pred_region
        %s571 = ssub.s32 %s29, 1
        %s572 = sand.u32 %s54, 1
        %s573 = scalar_lea.sflag [#allocation3], %s572
        %s574 = sand.u32 %s54, 1
        %s575 = smul.addr %s574, 8
        %s576 = scalar_lea.vmem [#allocation2], %s575
        // Predicated region
        $region77: #{tpu_custom_call.1} parent=75 // pred_check
          %p577 = pneg %p67
        $region78: #{tpu_custom_call.1} parent=75 // pred_check_branch
          %579 = sbr.rel (%p577) target = $region80
        $region79: #{tpu_custom_call.1} parent=75 // pred_region
          %580 = dma.done %s573, 128
        $region80: #{tpu_custom_call.1} parent=75 // pred_fallthru
          _
        %s581 = sand.u32 %s80, 1
        %s582 = scalar_lea.sflag [#allocation6], %s581
        %s583 = sand.u32 %s80, 1
        %s584 = scalar_lea.vmem [#allocation5], %s583
        // Predicated region
        $region81: #{tpu_custom_call.1} parent=75 // pred_check
          %p585 = pneg %p93
        $region82: #{tpu_custom_call.1} parent=75 // pred_check_branch
          %587 = sbr.rel (%p585) target = $region84
        $region83: #{tpu_custom_call.1} parent=75 // pred_region
          %588 = dma.done %s582, 16
        $region84: #{tpu_custom_call.1} parent=75 // pred_fallthru
          _
        %s589 = sand.u32 %s54, 1
        %s590 = scalar_lea.sflag [#allocation3], %s589
        %s591 = sand.u32 %s54, 1
        %s592 = smul.addr %s591, 8
        %s593 = scalar_lea.vmem [#allocation2], %s592
        %p594 = pneg %p67
        %p595 = pneg %p64
        %s596 = sand.u32 %s80, 1
        %s597 = scalar_lea.sflag [#allocation6], %s596
        %s598 = sand.u32 %s80, 1
        %s599 = scalar_lea.vmem [#allocation5], %s598
        %p600 = pneg %p93
        %p601 = pneg %p90
        %p602 = scmp.lt.s32.totalorder %s39, 1
        %s603 = scalar_select %p602, %s39, 1
        %s604 = smul.addr %s603, 4
        %s605 = smul.addr %s604, 4
        %s606 = scalar_lea.vmem %s2, %s605
        %p607 = pneg %p119
        %p608 = pneg %p116
        %p609 = scmp.lt.s32.totalorder %s39, 1
        %s610 = scalar_select %p609, %s39, 1
        %s611 = scalar_lea.vmem %s3, %s610
        %p612 = pneg %p145
        %p613 = pneg %p142
        %p614 = scmp.lt.s32.totalorder %s39, 1
        %s615 = scalar_select %p614, %s39, 1
        %s616 = smul.addr %s615, 4
        %s617 = smul.addr %s616, 4
        %s618 = scalar_lea.vmem %s4, %s617
        %p619 = pneg %p171
        %p620 = pneg %p168
        %p621 = scmp.lt.s32.totalorder %s39, 1
        %s622 = scalar_select %p621, %s39, 1
        %s623 = scalar_lea.vmem %s5, %s622
        %p624 = pneg %p197
        %p625 = pneg %p194
        %p626 = scmp.lt.s32.totalorder %s39, 1
        %s627 = scalar_select %p626, %s39, 1
        %s628 = scalar_lea.vmem %s6, %s627
        %p629 = pneg %p223
        %p630 = pneg %p220
        %p631 = scmp.lt.s32.totalorder %s39, 1
        %s632 = scalar_select %p631, %s39, 1
        %s633 = scalar_lea.vmem %s7, %s632
        %p634 = pneg %p249
        %p635 = pneg %p246
        %p636 = scmp.lt.s32.totalorder %s39, 1
        %s637 = scalar_select %p636, %s39, 1
        %s638 = smul.addr %s637, 4
        %s639 = smul.addr %s638, 4
        %s640 = scalar_lea.vmem %s8, %s639
        %p641 = pneg %p275
        %p642 = pneg %p272
        %p643 = scmp.lt.s32.totalorder %s39, 1
        %s644 = scalar_select %p643, %s39, 1
        %s645 = scalar_lea.vmem %s9, %s644
        %p646 = pneg %p301
        %p647 = pneg %p298
        %p648 = scmp.lt.s32.totalorder %s39, 1
        %s649 = scalar_select %p648, %s39, 1
        %s650 = smul.addr %s649, 8
        %s651 = smul.addr %s650, 4
        %s652 = scalar_lea.vmem %s10, %s651
        %p653 = pneg %p327
        %p654 = pneg %p324
        %p655 = scmp.lt.s32.totalorder %s39, 1
        %s656 = scalar_select %p655, %s39, 1
        %s657 = scalar_lea.vmem %s11, %s656
        %p658 = pneg %p353
        %p659 = pneg %p350
        %p660 = scmp.lt.s32.totalorder %s39, 1
        %s661 = scalar_select %p660, %s39, 1
        %s662 = scalar_lea.vmem %s12, %s661
        %p663 = pneg %p379
        %p664 = pneg %p376
        %p665 = scmp.lt.s32.totalorder %s39, 1
        %s666 = scalar_select %p665, %s39, 1
        %s667 = scalar_lea.vmem %s13, %s666
        %p668 = pneg %p405
        %p669 = pneg %p402
        %p670 = pneg %p431
        %p671 = pneg %p428
        %s672 = sand.u32 %s418, 1
        %s673 = scalar_lea.sflag [#allocation4], %s672
        %s674 = sand.u32 %s418, 1
        %s675 = smul.addr %s674, 8
        %s676 = scalar_lea.vmem [#allocation7], %s675
        %p677 = scmp.lt.s32.totalorder %s39, 1
        %s678 = scalar_select %p677, %s39, 1
        %s679 = smul.addr %s678, 4
        %s680 = smul.addr %s679, 4
        %s681 = scalar_lea.vmem %s2, %s680
        %p682 = scmp.lt.s32.totalorder %s39, 1
        %s683 = scalar_select %p682, %s39, 1
        %s684 = scalar_lea.vmem %s3, %s683
        %p685 = scmp.lt.s32.totalorder %s39, 1
        %s686 = scalar_select %p685, %s39, 1
        %s687 = smul.addr %s686, 4
        %s688 = smul.addr %s687, 4
        %s689 = scalar_lea.vmem %s4, %s688
        %p690 = scmp.lt.s32.totalorder %s39, 1
        %s691 = scalar_select %p690, %s39, 1
        %s692 = scalar_lea.vmem %s5, %s691
        %p693 = scmp.lt.s32.totalorder %s39, 1
        %s694 = scalar_select %p693, %s39, 1
        %s695 = scalar_lea.vmem %s6, %s694
        %p696 = scmp.lt.s32.totalorder %s39, 1
        %s697 = scalar_select %p696, %s39, 1
        %s698 = scalar_lea.vmem %s7, %s697
        %p699 = scmp.lt.s32.totalorder %s39, 1
        %s700 = scalar_select %p699, %s39, 1
        %s701 = smul.addr %s700, 4
        %s702 = smul.addr %s701, 4
        %s703 = scalar_lea.vmem %s8, %s702
        %p704 = scmp.lt.s32.totalorder %s39, 1
        %s705 = scalar_select %p704, %s39, 1
        %s706 = scalar_lea.vmem %s9, %s705
        %p707 = scmp.lt.s32.totalorder %s39, 1
        %s708 = scalar_select %p707, %s39, 1
        %s709 = smul.addr %s708, 8
        %s710 = smul.addr %s709, 4
        %s711 = scalar_lea.vmem %s10, %s710
        %p712 = scmp.lt.s32.totalorder %s39, 1
        %s713 = scalar_select %p712, %s39, 1
        %s714 = scalar_lea.vmem %s11, %s713
        %p715 = scmp.lt.s32.totalorder %s39, 1
        %s716 = scalar_select %p715, %s39, 1
        %s717 = scalar_lea.vmem %s12, %s716
        %p718 = scmp.lt.s32.totalorder %s39, 1
        %s719 = scalar_select %p718, %s39, 1
        %s720 = scalar_lea.vmem %s13, %s719
        %p722 = scmp.eq.s32.totalorder %s39, 0
        // Predicated region
        $region85: #{tpu_custom_call.1} parent=75 // pred_check
          %p723 = pneg %p722
        $region86: #{tpu_custom_call.1} parent=75 // pred_check_branch
          %725 = sbr.rel (%p723) target = $region88
        $region87: #{tpu_custom_call.1} parent=75 // pred_region
          %v726 = vld [vmem:[%s576] sm:$0xff]
          %vm727 = vcmask 261120
          %728 = vst.msk [vmem:[%s676] sm:$0xff] %vm727, %v726
        $region88: #{tpu_custom_call.1} parent=75 // pred_fallthru
          _
        %v729 = vld [vmem:[%s676] sm:$0xff]
        %v730 = vld [vmem:[%s584] sm:$0x1]
        %v732 = vlaneseq
        %v733 = vshrl.u32 %v732, 7
        %v734 = vsub.s32 0, %v733
        %v735 = vrot.slane %v730, %v734
        %v737 = vpack.c.bf16 %v729, %v729
        %v738 = vld [vmem:[%s681] sm:$0xf]
        %v739 = vld [vmem:[%s681 + $0x4] sm:$0xf]
        %v740 = vld [vmem:[%s681 + $0x8] sm:$0xf]
        %v741 = vld [vmem:[%s681 + $0xc] sm:$0xf]
        %v742 = vld [vmem:[%s684] sm:$0x1]
        %v744 = vlaneseq
        %v745 = vshrl.u32 %v744, 7
        %v746 = vsub.s32 0, %v745
        %v747 = vrot.slane %v742, %v746
        %v753 = vunpack.c.l.b16 %v738
        %v754 = vunpack.c.l.b16 %v739
        %v755 = vunpack.c.l.b16 %v740
        %v756 = vunpack.c.l.b16 %v741
        %v757 = vpack.c.b16 %v754, %v753
        %v758 = vpack.c.b16 %v756, %v755
        %vm761 = vcmask 261120
        %v763 = vsel %vm761, %v737, 0
        %765 = vmatprep.subr.bf16.mxu0 0
        %766 = vmatpush1.bf16.msra.mxu0 0
        %767 = vmatprep.subr.bf16.mxu0 0
        %768 = vmatpush1.bf16.msra.mxu0 0
        %769 = vmatprep.subr.bf16.mxu0 0
        %770 = vmatpush1.bf16.msra.mxu0 0
        %771 = vmatprep.subr.bf16.mxu0 0
        %772 = vmatpush1.bf16.msra.mxu0 0
        %773 = vmatprep.subr.bf16.mxu0 0
        %774 = vmatpush1.bf16.msra.mxu0 0
        %775 = vmatprep.subr.bf16.mxu0 0
        %776 = vmatpush1.bf16.msra.mxu0 0
        %777 = vmatprep.subr.bf16.mxu0 0
        %778 = vmatpush1.bf16.msra.mxu0 %v758
        %779 = vmatprep.subr.bf16.mxu0 0
        %780 = vmatpush1.bf16.msra.mxu0 %v757
        %781 = vmatprep.subr.bf16.mxu0 0
        %782 = vmatpush2.bf16.msra.mxu0 0
        %783 = vmatprep.subr.bf16.mxu0 0
        %784 = vmatpush2.bf16.msra.mxu0 0
        %785 = vmatprep.subr.bf16.mxu0 0
        %786 = vmatpush2.bf16.msra.mxu0 0
        %787 = vmatprep.subr.bf16.mxu0 0
        %788 = vmatpush2.bf16.msra.mxu0 0
        %789 = vmatprep.subr.bf16.mxu0 0
        %790 = vmatpush2.bf16.msra.mxu0 0
        %791 = vmatprep.subr.bf16.mxu0 0
        %792 = vmatpush2.bf16.msra.mxu0 0
        %793 = vmatprep.subr.bf16.mxu0 0
        %794 = vmatpush2.bf16.msra.mxu0 0
        %795 = vmatprep.subr.bf16.mxu0 0
        %796 = vmatpush2.bf16.msra.mxu0 0
        %797 = vmatprep.mubr.bf16.mxu0 0
        %798 = vmatmul.mubr.bf16.gmra.mxu0 %v763
        %v799 = vpop.f32.mrf.mxu0
        %v800 = vadd.f32 %v747, %v799
        %v801 = vpop.f32.mrf.mxu0
        %v802 = vpop.f32.mrf.mxu0
        %v803 = vpop.f32.mrf.mxu0
        %804 = vdwg.mxu0
        %v805 = vmul.f32 %v800, 0.35355338
        %v806 = vpack.c.bf16 %v805, %v805
        %v807 = vpack.c.bf16 %v800, %v800
        %809 = vrot.lane.b32.xlu0 %v807, 96
        %v810 = vpop.permute.xlu0 %809
        %vm811 = vcmask 64512
        %v813 = vsel %vm811, %v806, 0
        %v816 = vsel %vm811, %v810, 0
        %818 = vmatprep.subr.bf16.mxu0 0
        %819 = vmatpush1.bf16.xpose.msra.mxu0 0
        %820 = vmatprep.subr.bf16.mxu0 0
        %821 = vmatpush1.bf16.xpose.msra.mxu0 0
        %822 = vmatprep.subr.bf16.mxu0 0
        %823 = vmatpush1.bf16.xpose.msra.mxu0 0
        %824 = vmatprep.subr.bf16.mxu0 0
        %825 = vmatpush1.bf16.xpose.msra.mxu0 0
        %826 = vmatprep.subr.bf16.mxu0 0
        %827 = vmatpush1.bf16.xpose.msra.mxu0 0
        %828 = vmatprep.subr.bf16.mxu0 0
        %829 = vmatpush1.bf16.xpose.msra.mxu0 0
        %830 = vmatprep.subr.bf16.mxu0 0
        %831 = vmatpush1.bf16.xpose.msra.mxu0 0
        %832 = vmatprep.subr.bf16.mxu0 0
        %833 = vmatpush1.bf16.xpose.msra.mxu0 %v816
        %834 = vmatprep.subr.bf16.mxu0 0
        %835 = vmatpush2.bf16.xpose.msra.mxu0 0
        %836 = vmatprep.subr.bf16.mxu0 0
        %837 = vmatpush2.bf16.xpose.msra.mxu0 0
        %838 = vmatprep.subr.bf16.mxu0 0
        %839 = vmatpush2.bf16.xpose.msra.mxu0 0
        %840 = vmatprep.subr.bf16.mxu0 0
        %841 = vmatpush2.bf16.xpose.msra.mxu0 0
        %842 = vmatprep.subr.bf16.mxu0 0
        %843 = vmatpush2.bf16.xpose.msra.mxu0 0
        %844 = vmatprep.subr.bf16.mxu0 0
        %845 = vmatpush2.bf16.xpose.msra.mxu0 0
        %846 = vmatprep.subr.bf16.mxu0 0
        %847 = vmatpush2.bf16.xpose.msra.mxu0 0
        %848 = vmatprep.subr.bf16.mxu0 0
        %849 = vmatpush2.bf16.xpose.msra.mxu0 0
        %850 = vmatprep.mubr.bf16.mxu0 0
        %851 = vmatmul.mubr.bf16.gmra.mxu0 %v813
        %v852 = vpop.f32.mrf.mxu0
        %v853 = vadd.f32 %v735, %v852
        %v854 = vpop.f32.mrf.mxu0
        %v855 = vpop.f32.mrf.mxu0
        %v856 = vpop.f32.mrf.mxu0
        %857 = vdwg.mxu0
        %v858 = vsel %vm811, %v853, -inf
        %859 = vmax.xlane.f32.xlu0 %v858
        %v860 = vpop.xlane.xlu0 %859
        %v861 = vsub.f32 %v853, %v860
        %v862 = vmul.f32 %v861, 1.442695
        %v863 = vpow.pop %v862
        %v864 = vsel %vm811, %v863, 0.0
        %865 = vadd.xlane.f32.xlu0 %v864
        %v866 = vpop.xlane.xlu0 %865
        %v867 = vrcp.pop %v866
        %v868 = vmul.f32 %v863, %v867
        %v869 = vpack.c.bf16 %v868, %v868
        %870 = vrot.lane.b32.xlu0 %v807, 64
        %v871 = vpop.permute.xlu0 %870
        %v873 = vsel %vm811, %v869, 0
        %vm875 = vcmask 1043456
        %v877 = vsel %vm875, %v871, 0
        %879 = vmatprep.subr.bf16.mxu0 0
        %880 = vmatpush1.bf16.msra.mxu0 0
        %881 = vmatprep.subr.bf16.mxu0 0
        %882 = vmatpush1.bf16.msra.mxu0 0
        %883 = vmatprep.subr.bf16.mxu0 0
        %884 = vmatpush1.bf16.msra.mxu0 0
        %885 = vmatprep.subr.bf16.mxu0 0
        %886 = vmatpush1.bf16.msra.mxu0 0
        %887 = vmatprep.subr.bf16.mxu0 0
        %888 = vmatpush1.bf16.msra.mxu0 0
        %889 = vmatprep.subr.bf16.mxu0 0
        %890 = vmatpush1.bf16.msra.mxu0 0
        %891 = vmatprep.subr.bf16.mxu0 0
        %892 = vmatpush1.bf16.msra.mxu0 0
        %893 = vmatprep.subr.bf16.mxu0 0
        %894 = vmatpush1.bf16.msra.mxu0 %v877
        %895 = vmatprep.subr.bf16.mxu0 0
        %896 = vmatpush2.bf16.msra.mxu0 0
        %897 = vmatprep.subr.bf16.mxu0 0
        %898 = vmatpush2.bf16.msra.mxu0 0
        %899 = vmatprep.subr.bf16.mxu0 0
        %900 = vmatpush2.bf16.msra.mxu0 0
        %901 = vmatprep.subr.bf16.mxu0 0
        %902 = vmatpush2.bf16.msra.mxu0 0
        %903 = vmatprep.subr.bf16.mxu0 0
        %904 = vmatpush2.bf16.msra.mxu0 0
        %905 = vmatprep.subr.bf16.mxu0 0
        %906 = vmatpush2.bf16.msra.mxu0 0
        %907 = vmatprep.subr.bf16.mxu0 0
        %908 = vmatpush2.bf16.msra.mxu0 0
        %909 = vmatprep.subr.bf16.mxu0 0
        %910 = vmatpush2.bf16.msra.mxu0 0
        %911 = vmatprep.mubr.bf16.mxu0 0
        %912 = vmatmul.mubr.bf16.gmra.mxu0 %v873
        %v913 = vpop.f32.mrf.mxu0
        %v914 = vadd.f32 0.0, %v913
        %v915 = vpop.f32.mrf.mxu0
        %v916 = vpop.f32.mrf.mxu0
        %v917 = vpop.f32.mrf.mxu0
        %918 = vdwg.mxu0
        %920 = vrot.lane.b32.xlu0 %v806, 120
        %v921 = vpop.permute.xlu0 %920
        %922 = vrot.lane.b32.xlu0 %v807, 88
        %v923 = vpop.permute.xlu0 %922
        %v925 = vsel %vm811, %v921, 0
        %v928 = vsel %vm811, %v923, 0
        %930 = vmatprep.subr.bf16.mxu0 0
        %931 = vmatpush1.bf16.xpose.msra.mxu0 0
        %932 = vmatprep.subr.bf16.mxu0 0
        %933 = vmatpush1.bf16.xpose.msra.mxu0 0
        %934 = vmatprep.subr.bf16.mxu0 0
        %935 = vmatpush1.bf16.xpose.msra.mxu0 0
        %936 = vmatprep.subr.bf16.mxu0 0
        %937 = vmatpush1.bf16.xpose.msra.mxu0 0
        %938 = vmatprep.subr.bf16.mxu0 0
        %939 = vmatpush1.bf16.xpose.msra.mxu0 0
        %940 = vmatprep.subr.bf16.mxu0 0
        %941 = vmatpush1.bf16.xpose.msra.mxu0 0
        %942 = vmatprep.subr.bf16.mxu0 0
        %943 = vmatpush1.bf16.xpose.msra.mxu0 0
        %944 = vmatprep.subr.bf16.mxu0 0
        %945 = vmatpush1.bf16.xpose.msra.mxu0 %v928
        %946 = vmatprep.subr.bf16.mxu0 0
        %947 = vmatpush2.bf16.xpose.msra.mxu0 0
        %948 = vmatprep.subr.bf16.mxu0 0
        %949 = vmatpush2.bf16.xpose.msra.mxu0 0
        %950 = vmatprep.subr.bf16.mxu0 0
        %951 = vmatpush2.bf16.xpose.msra.mxu0 0
        %952 = vmatprep.subr.bf16.mxu0 0
        %953 = vmatpush2.bf16.xpose.msra.mxu0 0
        %954 = vmatprep.subr.bf16.mxu0 0
        %955 = vmatpush2.bf16.xpose.msra.mxu0 0
        %956 = vmatprep.subr.bf16.mxu0 0
        %957 = vmatpush2.bf16.xpose.msra.mxu0 0
        %958 = vmatprep.subr.bf16.mxu0 0
        %959 = vmatpush2.bf16.xpose.msra.mxu0 0
        %960 = vmatprep.subr.bf16.mxu0 0
        %961 = vmatpush2.bf16.xpose.msra.mxu0 0
        %962 = vmatprep.mubr.bf16.mxu0 0
        %963 = vmatmul.mubr.bf16.gmra.mxu0 %v925
        %v964 = vpop.f32.mrf.mxu0
        %v965 = vadd.f32 %v735, %v964
        %v966 = vpop.f32.mrf.mxu0
        %v967 = vpop.f32.mrf.mxu0
        %v968 = vpop.f32.mrf.mxu0
        %969 = vdwg.mxu0
        %v970 = vsel %vm811, %v965, -inf
        %971 = vmax.xlane.f32.xlu0 %v970
        %v972 = vpop.xlane.xlu0 %971
        %v973 = vsub.f32 %v965, %v972
        %v974 = vmul.f32 %v973, 1.442695
        %v975 = vpow.pop %v974
        %v976 = vsel %vm811, %v975, 0.0
        %977 = vadd.xlane.f32.xlu0 %v976
        %v978 = vpop.xlane.xlu0 %977
        %v979 = vrcp.pop %v978
        %v980 = vmul.f32 %v975, %v979
        %v981 = vpack.c.bf16 %v980, %v980
        %982 = vrot.lane.b32.xlu0 %v807, 56
        %v983 = vpop.permute.xlu0 %982
        %v985 = vsel %vm811, %v981, 0
        %v988 = vsel %vm875, %v983, 0
        %990 = vmatprep.subr.bf16.mxu0 0
        %991 = vmatpush1.bf16.msra.mxu0 0
        %992 = vmatprep.subr.bf16.mxu0 0
        %993 = vmatpush1.bf16.msra.mxu0 0
        %994 = vmatprep.subr.bf16.mxu0 0
        %995 = vmatpush1.bf16.msra.mxu0 0
        %996 = vmatprep.subr.bf16.mxu0 0
        %997 = vmatpush1.bf16.msra.mxu0 0
        %998 = vmatprep.subr.bf16.mxu0 0
        %999 = vmatpush1.bf16.msra.mxu0 0
        %1000 = vmatprep.subr.bf16.mxu0 0
        %1001 = vmatpush1.bf16.msra.mxu0 0
        %1002 = vmatprep.subr.bf16.mxu0 0
        %1003 = vmatpush1.bf16.msra.mxu0 0
        %1004 = vmatprep.subr.bf16.mxu0 0
        %1005 = vmatpush1.bf16.msra.mxu0 %v988
        %1006 = vmatprep.subr.bf16.mxu0 0
        %1007 = vmatpush2.bf16.msra.mxu0 0
        %1008 = vmatprep.subr.bf16.mxu0 0
        %1009 = vmatpush2.bf16.msra.mxu0 0
        %1010 = vmatprep.subr.bf16.mxu0 0
        %1011 = vmatpush2.bf16.msra.mxu0 0
        %1012 = vmatprep.subr.bf16.mxu0 0
        %1013 = vmatpush2.bf16.msra.mxu0 0
        %1014 = vmatprep.subr.bf16.mxu0 0
        %1015 = vmatpush2.bf16.msra.mxu0 0
        %1016 = vmatprep.subr.bf16.mxu0 0
        %1017 = vmatpush2.bf16.msra.mxu0 0
        %1018 = vmatprep.subr.bf16.mxu0 0
        %1019 = vmatpush2.bf16.msra.mxu0 0
        %1020 = vmatprep.subr.bf16.mxu0 0
        %1021 = vmatpush2.bf16.msra.mxu0 0
        %1022 = vmatprep.mubr.bf16.mxu0 0
        %1023 = vmatmul.mubr.bf16.gmra.mxu0 %v985
        %v1024 = vpop.f32.mrf.mxu0
        %v1025 = vadd.f32 0.0, %v1024
        %v1026 = vpop.f32.mrf.mxu0
        %v1027 = vpop.f32.mrf.mxu0
        %v1028 = vpop.f32.mrf.mxu0
        %1029 = vdwg.mxu0
        %1030 = vrot.lane.b32.xlu0 %v806, 112
        %v1031 = vpop.permute.xlu0 %1030
        %1032 = vrot.lane.b32.xlu0 %v807, 80
        %v1033 = vpop.permute.xlu0 %1032
        %v1035 = vsel %vm811, %v1031, 0
        %v1038 = vsel %vm811, %v1033, 0
        %1040 = vmatprep.subr.bf16.mxu0 0
        %1041 = vmatpush1.bf16.xpose.msra.mxu0 0
        %1042 = vmatprep.subr.bf16.mxu0 0
        %1043 = vmatpush1.bf16.xpose.msra.mxu0 0
        %1044 = vmatprep.subr.bf16.mxu0 0
        %1045 = vmatpush1.bf16.xpose.msra.mxu0 0
        %1046 = vmatprep.subr.bf16.mxu0 0
        %1047 = vmatpush1.bf16.xpose.msra.mxu0 0
        %1048 = vmatprep.subr.bf16.mxu0 0
        %1049 = vmatpush1.bf16.xpose.msra.mxu0 0
        %1050 = vmatprep.subr.bf16.mxu0 0
        %1051 = vmatpush1.bf16.xpose.msra.mxu0 0
        %1052 = vmatprep.subr.bf16.mxu0 0
        %1053 = vmatpush1.bf16.xpose.msra.mxu0 0
        %1054 = vmatprep.subr.bf16.mxu0 0
        %1055 = vmatpush1.bf16.xpose.msra.mxu0 %v1038
        %1056 = vmatprep.subr.bf16.mxu0 0
        %1057 = vmatpush2.bf16.xpose.msra.mxu0 0
        %1058 = vmatprep.subr.bf16.mxu0 0
        %1059 = vmatpush2.bf16.xpose.msra.mxu0 0
        %1060 = vmatprep.subr.bf16.mxu0 0
        %1061 = vmatpush2.bf16.xpose.msra.mxu0 0
        %1062 = vmatprep.subr.bf16.mxu0 0
        %1063 = vmatpush2.bf16.xpose.msra.mxu0 0
        %1064 = vmatprep.subr.bf16.mxu0 0
        %1065 = vmatpush2.bf16.xpose.msra.mxu0 0
        %1066 = vmatprep.subr.bf16.mxu0 0
        %1067 = vmatpush2.bf16.xpose.msra.mxu0 0
        %1068 = vmatprep.subr.bf16.mxu0 0
        %1069 = vmatpush2.bf16.xpose.msra.mxu0 0
        %1070 = vmatprep.subr.bf16.mxu0 0
        %1071 = vmatpush2.bf16.xpose.msra.mxu0 0
        %1072 = vmatprep.mubr.bf16.mxu0 0
        %1073 = vmatmul.mubr.bf16.gmra.mxu0 %v1035
        %v1074 = vpop.f32.mrf.mxu0
        %v1075 = vadd.f32 %v735, %v1074
        %v1076 = vpop.f32.mrf.mxu0
        %v1077 = vpop.f32.mrf.mxu0
        %v1078 = vpop.f32.mrf.mxu0
        %1079 = vdwg.mxu0
        %v1080 = vsel %vm811, %v1075, -inf
        %1081 = vmax.xlane.f32.xlu0 %v1080
        %v1082 = vpop.xlane.xlu0 %1081
        %v1083 = vsub.f32 %v1075, %v1082
        %v1084 = vmul.f32 %v1083, 1.442695
        %v1085 = vpow.pop %v1084
        %v1086 = vsel %vm811, %v1085, 0.0
        %1087 = vadd.xlane.f32.xlu0 %v1086
        %v1088 = vpop.xlane.xlu0 %1087
        %v1089 = vrcp.pop %v1088
        %v1090 = vmul.f32 %v1085, %v1089
        %v1091 = vpack.c.bf16 %v1090, %v1090
        %1092 = vrot.lane.b32.xlu0 %v807, 48
        %v1093 = vpop.permute.xlu0 %1092
        %v1095 = vsel %vm811, %v1091, 0
        %v1098 = vsel %vm875, %v1093, 0
        %1100 = vmatprep.subr.bf16.mxu0 0
        %1101 = vmatpush1.bf16.msra.mxu0 0
        %1102 = vmatprep.subr.bf16.mxu0 0
        %1103 = vmatpush1.bf16.msra.mxu0 0
        %1104 = vmatprep.subr.bf16.mxu0 0
        %1105 = vmatpush1.bf16.msra.mxu0 0
        %1106 = vmatprep.subr.bf16.mxu0 0
        %1107 = vmatpush1.bf16.msra.mxu0 0
        %1108 = vmatprep.subr.bf16.mxu0 0
        %1109 = vmatpush1.bf16.msra.mxu0 0
        %1110 = vmatprep.subr.bf16.mxu0 0
        %1111 = vmatpush1.bf16.msra.mxu0 0
        %1112 = vmatprep.subr.bf16.mxu0 0
        %1113 = vmatpush1.bf16.msra.mxu0 0
        %1114 = vmatprep.subr.bf16.mxu0 0
        %1115 = vmatpush1.bf16.msra.mxu0 %v1098
        %1116 = vmatprep.subr.bf16.mxu0 0
        %1117 = vmatpush2.bf16.msra.mxu0 0
        %1118 = vmatprep.subr.bf16.mxu0 0
        %1119 = vmatpush2.bf16.msra.mxu0 0
        %1120 = vmatprep.subr.bf16.mxu0 0
        %1121 = vmatpush2.bf16.msra.mxu0 0
        %1122 = vmatprep.subr.bf16.mxu0 0
        %1123 = vmatpush2.bf16.msra.mxu0 0
        %1124 = vmatprep.subr.bf16.mxu0 0
        %1125 = vmatpush2.bf16.msra.mxu0 0
        %1126 = vmatprep.subr.bf16.mxu0 0
        %1127 = vmatpush2.bf16.msra.mxu0 0
        %1128 = vmatprep.subr.bf16.mxu0 0
        %1129 = vmatpush2.bf16.msra.mxu0 0
        %1130 = vmatprep.subr.bf16.mxu0 0
        %1131 = vmatpush2.bf16.msra.mxu0 0
        %1132 = vmatprep.mubr.bf16.mxu0 0
        %1133 = vmatmul.mubr.bf16.gmra.mxu0 %v1095
        %v1134 = vpop.f32.mrf.mxu0
        %v1135 = vadd.f32 0.0, %v1134
        %v1136 = vpop.f32.mrf.mxu0
        %v1137 = vpop.f32.mrf.mxu0
        %v1138 = vpop.f32.mrf.mxu0
        %1139 = vdwg.mxu0
        %1140 = vrot.lane.b32.xlu0 %v806, 104
        %v1141 = vpop.permute.xlu0 %1140
        %1142 = vrot.lane.b32.xlu0 %v807, 72
        %v1143 = vpop.permute.xlu0 %1142
        %v1145 = vsel %vm811, %v1141, 0
        %v1148 = vsel %vm811, %v1143, 0
        %1150 = vmatprep.subr.bf16.mxu0 0
        %1151 = vmatpush1.bf16.xpose.msra.mxu0 0
        %1152 = vmatprep.subr.bf16.mxu0 0
        %1153 = vmatpush1.bf16.xpose.msra.mxu0 0
        %1154 = vmatprep.subr.bf16.mxu0 0
        %1155 = vmatpush1.bf16.xpose.msra.mxu0 0
        %1156 = vmatprep.subr.bf16.mxu0 0
        %1157 = vmatpush1.bf16.xpose.msra.mxu0 0
        %1158 = vmatprep.subr.bf16.mxu0 0
        %1159 = vmatpush1.bf16.xpose.msra.mxu0 0
        %1160 = vmatprep.subr.bf16.mxu0 0
        %1161 = vmatpush1.bf16.xpose.msra.mxu0 0
        %1162 = vmatprep.subr.bf16.mxu0 0
        %1163 = vmatpush1.bf16.xpose.msra.mxu0 0
        %1164 = vmatprep.subr.bf16.mxu0 0
        %1165 = vmatpush1.bf16.xpose.msra.mxu0 %v1148
        %1166 = vmatprep.subr.bf16.mxu0 0
        %1167 = vmatpush2.bf16.xpose.msra.mxu0 0
        %1168 = vmatprep.subr.bf16.mxu0 0
        %1169 = vmatpush2.bf16.xpose.msra.mxu0 0
        %1170 = vmatprep.subr.bf16.mxu0 0
        %1171 = vmatpush2.bf16.xpose.msra.mxu0 0
        %1172 = vmatprep.subr.bf16.mxu0 0
        %1173 = vmatpush2.bf16.xpose.msra.mxu0 0
        %1174 = vmatprep.subr.bf16.mxu0 0
        %1175 = vmatpush2.bf16.xpose.msra.mxu0 0
        %1176 = vmatprep.subr.bf16.mxu0 0
        %1177 = vmatpush2.bf16.xpose.msra.mxu0 0
        %1178 = vmatprep.subr.bf16.mxu0 0
        %1179 = vmatpush2.bf16.xpose.msra.mxu0 0
        %1180 = vmatprep.subr.bf16.mxu0 0
        %1181 = vmatpush2.bf16.xpose.msra.mxu0 0
        %1182 = vmatprep.mubr.bf16.mxu0 0
        %1183 = vmatmul.mubr.bf16.gmra.mxu0 %v1145
        %v1184 = vpop.f32.mrf.mxu0
        %v1185 = vadd.f32 %v735, %v1184
        %v1186 = vpop.f32.mrf.mxu0
        %v1187 = vpop.f32.mrf.mxu0
        %v1188 = vpop.f32.mrf.mxu0
        %1189 = vdwg.mxu0
        %v1190 = vsel %vm811, %v1185, -inf
        %1191 = vmax.xlane.f32.xlu0 %v1190
        %v1192 = vpop.xlane.xlu0 %1191
        %v1193 = vsub.f32 %v1185, %v1192
        %v1194 = vmul.f32 %v1193, 1.442695
        %v1195 = vpow.pop %v1194
        %v1196 = vsel %vm811, %v1195, 0.0
        %1197 = vadd.xlane.f32.xlu0 %v1196
        %v1198 = vpop.xlane.xlu0 %1197
        %v1199 = vrcp.pop %v1198
        %v1200 = vmul.f32 %v1195, %v1199
        %v1201 = vpack.c.bf16 %v1200, %v1200
        %1202 = vrot.lane.b32.xlu0 %v807, 40
        %v1203 = vpop.permute.xlu0 %1202
        %v1205 = vsel %vm811, %v1201, 0
        %v1208 = vsel %vm875, %v1203, 0
        %1210 = vmatprep.subr.bf16.mxu0 0
        %1211 = vmatpush1.bf16.msra.mxu0 0
        %1212 = vmatprep.subr.bf16.mxu0 0
        %1213 = vmatpush1.bf16.msra.mxu0 0
        %1214 = vmatprep.subr.bf16.mxu0 0
        %1215 = vmatpush1.bf16.msra.mxu0 0
        %1216 = vmatprep.subr.bf16.mxu0 0
        %1217 = vmatpush1.bf16.msra.mxu0 0
        %1218 = vmatprep.subr.bf16.mxu0 0
        %1219 = vmatpush1.bf16.msra.mxu0 0
        %1220 = vmatprep.subr.bf16.mxu0 0
        %1221 = vmatpush1.bf16.msra.mxu0 0
        %1222 = vmatprep.subr.bf16.mxu0 0
        %1223 = vmatpush1.bf16.msra.mxu0 0
        %1224 = vmatprep.subr.bf16.mxu0 0
        %1225 = vmatpush1.bf16.msra.mxu0 %v1208
        %1226 = vmatprep.subr.bf16.mxu0 0
        %1227 = vmatpush2.bf16.msra.mxu0 0
        %1228 = vmatprep.subr.bf16.mxu0 0
        %1229 = vmatpush2.bf16.msra.mxu0 0
        %1230 = vmatprep.subr.bf16.mxu0 0
        %1231 = vmatpush2.bf16.msra.mxu0 0
        %1232 = vmatprep.subr.bf16.mxu0 0
        %1233 = vmatpush2.bf16.msra.mxu0 0
        %1234 = vmatprep.subr.bf16.mxu0 0
        %1235 = vmatpush2.bf16.msra.mxu0 0
        %1236 = vmatprep.subr.bf16.mxu0 0
        %1237 = vmatpush2.bf16.msra.mxu0 0
        %1238 = vmatprep.subr.bf16.mxu0 0
        %1239 = vmatpush2.bf16.msra.mxu0 0
        %1240 = vmatprep.subr.bf16.mxu0 0
        %1241 = vmatpush2.bf16.msra.mxu0 0
        %1242 = vmatprep.mubr.bf16.mxu0 0
        %1243 = vmatmul.mubr.bf16.gmra.mxu0 %v1205
        %v1244 = vpop.f32.mrf.mxu0
        %v1245 = vadd.f32 0.0, %v1244
        %v1246 = vpop.f32.mrf.mxu0
        %v1247 = vpop.f32.mrf.mxu0
        %v1248 = vpop.f32.mrf.mxu0
        %1249 = vdwg.mxu0
        %1251 = vrot.lane.b32.xlu0 %v1025, 8
        %v1252 = vpop.permute.xlu0 %1251
        %1255 = vrot.lane.b32.xlu0 %v1135, 16
        %v1256 = vpop.permute.xlu0 %1255
        %1259 = vrot.lane.b32.xlu0 %v1245, 24
        %v1260 = vpop.permute.xlu0 %1259
        %v1262 = vsel %vm811, %v914, %v1252
        %vm1263 = vcmask 130048
        %v1264 = vsel %vm1263, %v1262, %v1256
        %vm1265 = vcmask 195584
        %v1266 = vsel %vm1265, %v1264, %v1260
        %v1267 = vpack.c.bf16 %v1266, %v1266
        %v1268 = vld [vmem:[%s689] sm:$0xf]
        %v1269 = vld [vmem:[%s689 + $0x4] sm:$0xf]
        %v1270 = vld [vmem:[%s689 + $0x8] sm:$0xf]
        %v1271 = vld [vmem:[%s689 + $0xc] sm:$0xf]
        %v1272 = vld [vmem:[%s692] sm:$0x1]
        %v1274 = vlaneseq
        %v1275 = vshrl.u32 %v1274, 7
        %v1276 = vsub.s32 0, %v1275
        %v1277 = vrot.slane %v1272, %v1276
        %v1283 = vunpack.c.l.b16 %v1268
        %v1284 = vunpack.c.l.b16 %v1269
        %v1285 = vunpack.c.l.b16 %v1270
        %v1286 = vunpack.c.l.b16 %v1271
        %v1287 = vpack.c.b16 %v1284, %v1283
        %v1288 = vpack.c.b16 %v1286, %v1285
        %v1292 = vsel %vm761, %v1267, 0
        %1294 = vmatprep.subr.bf16.mxu0 0
        %1295 = vmatpush1.bf16.msra.mxu0 0
        %1296 = vmatprep.subr.bf16.mxu0 0
        %1297 = vmatpush1.bf16.msra.mxu0 0
        %1298 = vmatprep.subr.bf16.mxu0 0
        %1299 = vmatpush1.bf16.msra.mxu0 0
        %1300 = vmatprep.subr.bf16.mxu0 0
        %1301 = vmatpush1.bf16.msra.mxu0 0
        %1302 = vmatprep.subr.bf16.mxu0 0
        %1303 = vmatpush1.bf16.msra.mxu0 0
        %1304 = vmatprep.subr.bf16.mxu0 0
        %1305 = vmatpush1.bf16.msra.mxu0 0
        %1306 = vmatprep.subr.bf16.mxu0 0
        %1307 = vmatpush1.bf16.msra.mxu0 %v1288
        %1308 = vmatprep.subr.bf16.mxu0 0
        %1309 = vmatpush1.bf16.msra.mxu0 %v1287
        %1310 = vmatprep.subr.bf16.mxu0 0
        %1311 = vmatpush2.bf16.msra.mxu0 0
        %1312 = vmatprep.subr.bf16.mxu0 0
        %1313 = vmatpush2.bf16.msra.mxu0 0
        %1314 = vmatprep.subr.bf16.mxu0 0
        %1315 = vmatpush2.bf16.msra.mxu0 0
        %1316 = vmatprep.subr.bf16.mxu0 0
        %1317 = vmatpush2.bf16.msra.mxu0 0
        %1318 = vmatprep.subr.bf16.mxu0 0
        %1319 = vmatpush2.bf16.msra.mxu0 0
        %1320 = vmatprep.subr.bf16.mxu0 0
        %1321 = vmatpush2.bf16.msra.mxu0 0
        %1322 = vmatprep.subr.bf16.mxu0 0
        %1323 = vmatpush2.bf16.msra.mxu0 0
        %1324 = vmatprep.subr.bf16.mxu0 0
        %1325 = vmatpush2.bf16.msra.mxu0 0
        %1326 = vmatprep.mubr.bf16.mxu0 0
        %1327 = vmatmul.mubr.bf16.gmra.mxu0 %v1292
        %v1328 = vpop.f32.mrf.mxu0
        %v1329 = vadd.f32 %v1277, %v1328
        %v1330 = vpop.f32.mrf.mxu0
        %v1331 = vpop.f32.mrf.mxu0
        %v1332 = vpop.f32.mrf.mxu0
        %1333 = vdwg.mxu0
        %v1334 = vadd.f32 %v729, %v1329
        %v1335 = vld [vmem:[%s695] sm:$0x1]
        %v1336 = vld [vmem:[%s698] sm:$0x1]
        %v1337 = vsel %vm761, %v1334, 0.0
        %1338 = vadd.xlane.f32.xlu0 %v1337
        %v1339 = vpop.xlane.xlu0 %1338
        %v1340 = vrcp.pop 32.0
        %v1341 = vmul.f32 %v1339, %v1340
        %v1342 = vsub.f32 %v1334, %v1341
        %v1343 = vmul.f32 %v1342, %v1342
        %v1344 = vsel %vm761, %v1343, 0.0
        %1345 = vadd.xlane.f32.xlu0 %v1344
        %v1346 = vpop.xlane.xlu0 %1345
        %v1347 = vmul.f32 %v1346, %v1340
        %v1348 = vadd.f32 %v1347, 1e-05
        %v1349 = vrsqrt.pop %v1348
        %v1350 = vmul.f32 %v1342, %v1349
        %v1352 = vlaneseq
        %v1353 = vshrl.u32 %v1352, 7
        %v1354 = vsub.s32 0, %v1353
        %v1355 = vrot.slane %v1335, %v1354
        %v1357 = vmul.f32 %v1350, %v1355
        %v1359 = vlaneseq
        %v1360 = vshrl.u32 %v1359, 7
        %v1361 = vsub.s32 0, %v1360
        %v1362 = vrot.slane %v1336, %v1361
        %v1364 = vadd.f32 %v1357, %v1362
        %v1365 = vpack.c.bf16 %v1364, %v1364
        %v1366 = vld [vmem:[%s703] sm:$0xf]
        %v1367 = vld [vmem:[%s703 + $0x4] sm:$0xf]
        %v1368 = vld [vmem:[%s703 + $0x8] sm:$0xf]
        %v1369 = vld [vmem:[%s703 + $0xc] sm:$0xf]
        %v1370 = vld [vmem:[%s706] sm:$0x1]
        %v1372 = vlaneseq
        %v1373 = vshrl.u32 %v1372, 7
        %v1374 = vsub.s32 0, %v1373
        %v1375 = vrot.slane %v1370, %v1374
        %v1381 = vunpack.c.l.b16 %v1366
        %v1382 = vunpack.c.l.b16 %v1367
        %v1383 = vunpack.c.l.b16 %v1368
        %v1384 = vunpack.c.l.b16 %v1369
        %v1385 = vpack.c.b16 %v1382, %v1381
        %v1386 = vpack.c.b16 %v1384, %v1383
        %v1390 = vsel %vm761, %v1365, 0
        %1392 = vmatprep.subr.bf16.mxu0 0
        %1393 = vmatpush1.bf16.msra.mxu0 0
        %1394 = vmatprep.subr.bf16.mxu0 0
        %1395 = vmatpush1.bf16.msra.mxu0 0
        %1396 = vmatprep.subr.bf16.mxu0 0
        %1397 = vmatpush1.bf16.msra.mxu0 0
        %1398 = vmatprep.subr.bf16.mxu0 0
        %1399 = vmatpush1.bf16.msra.mxu0 0
        %1400 = vmatprep.subr.bf16.mxu0 0
        %1401 = vmatpush1.bf16.msra.mxu0 0
        %1402 = vmatprep.subr.bf16.mxu0 0
        %1403 = vmatpush1.bf16.msra.mxu0 0
        %1404 = vmatprep.subr.bf16.mxu0 0
        %1405 = vmatpush1.bf16.msra.mxu0 %v1386
        %1406 = vmatprep.subr.bf16.mxu0 0
        %1407 = vmatpush1.bf16.msra.mxu0 %v1385
        %1408 = vmatprep.subr.bf16.mxu0 0
        %1409 = vmatpush2.bf16.msra.mxu0 0
        %1410 = vmatprep.subr.bf16.mxu0 0
        %1411 = vmatpush2.bf16.msra.mxu0 0
        %1412 = vmatprep.subr.bf16.mxu0 0
        %1413 = vmatpush2.bf16.msra.mxu0 0
        %1414 = vmatprep.subr.bf16.mxu0 0
        %1415 = vmatpush2.bf16.msra.mxu0 0
        %1416 = vmatprep.subr.bf16.mxu0 0
        %1417 = vmatpush2.bf16.msra.mxu0 0
        %1418 = vmatprep.subr.bf16.mxu0 0
        %1419 = vmatpush2.bf16.msra.mxu0 0
        %1420 = vmatprep.subr.bf16.mxu0 0
        %1421 = vmatpush2.bf16.msra.mxu0 0
        %1422 = vmatprep.subr.bf16.mxu0 0
        %1423 = vmatpush2.bf16.msra.mxu0 0
        %1424 = vmatprep.mubr.bf16.mxu0 0
        %1425 = vmatmul.mubr.bf16.gmra.mxu0 %v1390
        %v1426 = vpop.f32.mrf.mxu0
        %v1427 = vadd.f32 %v1375, %v1426
        %v1428 = vpop.f32.mrf.mxu0
        %v1429 = vpop.f32.mrf.mxu0
        %v1430 = vpop.f32.mrf.mxu0
        %1431 = vdwg.mxu0
        %v1432 = vmax.f32 %v1427, 0.0
        %v1433 = vpack.c.bf16 %v1432, %v1432
        %v1434 = vld [vmem:[%s711] sm:$0xf]
        %v1435 = vld [vmem:[%s711 + $0x4] sm:$0xf]
        %v1436 = vld [vmem:[%s711 + $0x8] sm:$0xf]
        %v1437 = vld [vmem:[%s711 + $0xc] sm:$0xf]
        %v1438 = vld [vmem:[%s711 + $0x10] sm:$0xf]
        %v1439 = vld [vmem:[%s711 + $0x14] sm:$0xf]
        %v1440 = vld [vmem:[%s711 + $0x18] sm:$0xf]
        %v1441 = vld [vmem:[%s711 + $0x1c] sm:$0xf]
        %v1442 = vld [vmem:[%s714] sm:$0x1]
        %v1444 = vlaneseq
        %v1445 = vshrl.u32 %v1444, 7
        %v1446 = vsub.s32 0, %v1445
        %v1447 = vrot.slane %v1442, %v1446
        %v1457 = vunpack.c.l.b16 %v1434
        %v1458 = vunpack.c.l.b16 %v1435
        %v1459 = vunpack.c.l.b16 %v1436
        %v1460 = vunpack.c.l.b16 %v1437
        %v1461 = vunpack.c.l.b16 %v1438
        %v1462 = vunpack.c.l.b16 %v1439
        %v1463 = vunpack.c.l.b16 %v1440
        %v1464 = vunpack.c.l.b16 %v1441
        %v1465 = vpack.c.b16 %v1458, %v1457
        %v1466 = vpack.c.b16 %v1460, %v1459
        %v1467 = vpack.c.b16 %v1462, %v1461
        %v1468 = vpack.c.b16 %v1464, %v1463
        %vm1473 = vcmask 523264
        %v1475 = vsel %vm1473, %v1433, 0
        %1477 = vmatprep.subr.bf16.mxu0 0
        %1478 = vmatpush1.bf16.msra.mxu0 0
        %1479 = vmatprep.subr.bf16.mxu0 0
        %1480 = vmatpush1.bf16.msra.mxu0 0
        %1481 = vmatprep.subr.bf16.mxu0 0
        %1482 = vmatpush1.bf16.msra.mxu0 0
        %1483 = vmatprep.subr.bf16.mxu0 0
        %1484 = vmatpush1.bf16.msra.mxu0 0
        %1485 = vmatprep.subr.bf16.mxu0 0
        %1486 = vmatpush1.bf16.msra.mxu0 %v1468
        %1487 = vmatprep.subr.bf16.mxu0 0
        %1488 = vmatpush1.bf16.msra.mxu0 %v1467
        %1489 = vmatprep.subr.bf16.mxu0 0
        %1490 = vmatpush1.bf16.msra.mxu0 %v1466
        %1491 = vmatprep.subr.bf16.mxu0 0
        %1492 = vmatpush1.bf16.msra.mxu0 %v1465
        %1493 = vmatprep.subr.bf16.mxu0 0
        %1494 = vmatpush2.bf16.msra.mxu0 0
        %1495 = vmatprep.subr.bf16.mxu0 0
        %1496 = vmatpush2.bf16.msra.mxu0 0
        %1497 = vmatprep.subr.bf16.mxu0 0
        %1498 = vmatpush2.bf16.msra.mxu0 0
        %1499 = vmatprep.subr.bf16.mxu0 0
        %1500 = vmatpush2.bf16.msra.mxu0 0
        %1501 = vmatprep.subr.bf16.mxu0 0
        %1502 = vmatpush2.bf16.msra.mxu0 0
        %1503 = vmatprep.subr.bf16.mxu0 0
        %1504 = vmatpush2.bf16.msra.mxu0 0
        %1505 = vmatprep.subr.bf16.mxu0 0
        %1506 = vmatpush2.bf16.msra.mxu0 0
        %1507 = vmatprep.subr.bf16.mxu0 0
        %1508 = vmatpush2.bf16.msra.mxu0 0
        %1509 = vmatprep.mubr.bf16.mxu0 0
        %1510 = vmatmul.mubr.bf16.gmra.mxu0 %v1475
        %v1511 = vpop.f32.mrf.mxu0
        %v1512 = vadd.f32 %v1447, %v1511
        %v1513 = vpop.f32.mrf.mxu0
        %v1514 = vpop.f32.mrf.mxu0
        %v1515 = vpop.f32.mrf.mxu0
        %1516 = vdwg.mxu0
        %v1517 = vadd.f32 %v1364, %v1512
        %v1518 = vld [vmem:[%s717] sm:$0x1]
        %v1519 = vld [vmem:[%s720] sm:$0x1]
        %v1520 = vsel %vm761, %v1517, 0.0
        %1521 = vadd.xlane.f32.xlu0 %v1520
        %v1522 = vpop.xlane.xlu0 %1521
        %v1523 = vmul.f32 %v1522, %v1340
        %v1524 = vsub.f32 %v1517, %v1523
        %v1525 = vmul.f32 %v1524, %v1524
        %v1526 = vsel %vm761, %v1525, 0.0
        %1527 = vadd.xlane.f32.xlu0 %v1526
        %v1528 = vpop.xlane.xlu0 %1527
        %v1529 = vmul.f32 %v1528, %v1340
        %v1530 = vadd.f32 %v1529, 1e-05
        %v1531 = vrsqrt.pop %v1530
        %v1532 = vmul.f32 %v1524, %v1531
        %v1534 = vlaneseq
        %v1535 = vshrl.u32 %v1534, 7
        %v1536 = vsub.s32 0, %v1535
        %v1537 = vrot.slane %v1518, %v1536
        %v1539 = vmul.f32 %v1532, %v1537
        %v1541 = vlaneseq
        %v1542 = vshrl.u32 %v1541, 7
        %v1543 = vsub.s32 0, %v1542
        %v1544 = vrot.slane %v1519, %v1543
        %v1546 = vadd.f32 %v1539, %v1544
        %1547 = vst.msk [vmem:[%s676] sm:$0xff] %vm761, %v1546
        %s1548 = sand.u32 %s418, 1
        %s1549 = scalar_lea.sflag [#allocation4], %s1548
        %s1550 = sand.u32 %s418, 1
        %s1551 = smul.addr %s1550, 8
        %s1552 = scalar_lea.vmem [#allocation7], %s1551
        // Predicated region
        $region89: #{tpu_custom_call.1} parent=75 // pred_check
          %p1553 = pneg %p428
        $region90: #{tpu_custom_call.1} parent=75 // pred_check_branch
          %1555 = sbr.rel (%p1553) target = $region92
        $region91: #{tpu_custom_call.1} parent=75 // pred_region
          %s1557 = ssub.s32 128, 128
          %1558 = vsyncadd %s1549, %s1557
          %s1559 = smul.addr %s38, 128
          %s1560 = scalar_lea.hbm %s14, %s1559
          %s1562 = sshll.u32 %s1552, 4
          %s1563 = int_to_ptr.vmem [resolvable:$true] %s1562
          %1565 = dma.vmem_to_hbm [thread:$0]  %s1563, 128, %s1560, %s1549
        $region92: #{tpu_custom_call.1} parent=75 // pred_fallthru
          _
      $region76: #{tpu_custom_call.1} parent=5 // pred_fallthru
        _
      %p1566 = scmp.le.s32.totalorder 2, %s29
      // Predicated region
      $region93: #{tpu_custom_call.1} parent=5 // pred_check
        %p1567 = pneg %p1566
      $region94: #{tpu_custom_call.1} parent=5 // pred_check_branch
        %1569 = sbr.rel (%p1567) target = $region96
      $region95: #{tpu_custom_call.1} parent=5 // pred_region
        %s1570 = ssub.s32 %s29, 2
        // Predicated region
        $region97: #{tpu_custom_call.1} parent=95 // pred_check
          %p1571 = pneg %p434
        $region98: #{tpu_custom_call.1} parent=95 // pred_check_branch
          %1573 = sbr.rel (%p1571) target = $region100
        $region99: #{tpu_custom_call.1} parent=95 // pred_region
          %s1574 = sand.u32 %s419, 1
          %s1575 = scalar_lea.sflag [#allocation4], %s1574
          %s1576 = sand.u32 %s419, 1
          %s1577 = smul.addr %s1576, 8
          %s1578 = scalar_lea.vmem [#allocation7], %s1577
          %1579 = dma.done %s1575, 128
        $region100: #{tpu_custom_call.1} parent=95 // pred_fallthru
          _
      $region96: #{tpu_custom_call.1} parent=5 // pred_fallthru
        _
    $region6: #{tpu_custom_call.1} parent=1 // loop_footer
      %s33 = sadd.s32 1, %s29
    $region7: #{tpu_custom_call.1} parent=1 // loop_footer_branch
      %28 = sbr.rel target = $region3
    $region8: #{tpu_custom_call.1} parent=1 // loop_exit
      _
    %1580 = vsyncpa [#allocation3], 1
    %s1581 = scalar_lea.sflag [#allocation3], 1
    %1582 = vsyncpa %s1581, 1
    %1583 = vsyncpa [#allocation6], 1
    %s1584 = scalar_lea.sflag [#allocation6], 1
    %1585 = vsyncpa %s1584, 1
    %1586 = vsyncpa [#allocation4], 1
    %s1587 = scalar_lea.sflag [#allocation4], 1
    %1588 = vsyncpa %s1587, 1

</llo_original>
